<compile_context>
chip_gen: v7x
topology: tpu7x:2x2x1
jax: 0.10.0
libtpu: 0.0.40
codegen_flags: <defaults>
</compile_context>

<pallas_src>
import math
import functools

import jax
import jax.numpy as jnp
from jax.experimental import pallas as pl
from jax.experimental.pallas import tpu as pltpu

_VMEM_LIMIT = 56 * 1024 * 1024  # fits v7x (64 MiB); well above 16/32 MiB defaults


# ----------------------------- attention kernel -------------------------------
def attention_kernel(x_ref, cos_ref, sin_ref, wqkv_ref, bqkv_ref, wo_ref, bo_ref,
                     h_ref, xn_sc, acc_sc,
                     *, num_groups, group, head_dim, eps, causal):
  g = pl.program_id(1)
  cdt = wqkv_ref.dtype                      # bf16 matmuls, f32 accumulation
  gw = group * head_dim
  half = head_dim // 2

  # ---- per-batch prologue: attention_norm(x) (bf16 scratch) + acc init ----
  @pl.when(g == 0)
  def _init():
    x = x_ref[...]                                              # (S, D) f32
    ms = jnp.mean(x * x, axis=-1, keepdims=True)
    xn_sc[...] = (x * jax.lax.rsqrt(ms + eps)).astype(xn_sc.dtype)
    # fold the wo bias into the attention-output accumulator init
    acc_sc[...] = jnp.broadcast_to(bo_ref[...], acc_sc.shape).astype(jnp.float32)

  xn = xn_sc[...]                                               # (S, D) bf16

  # ---- fused Q|K|V projection for this head group (one wide matmul) ----
  qkv = jnp.dot(xn, wqkv_ref[...],
                preferred_element_type=jnp.float32) + bqkv_ref[...]   # (S, 3*gw) f32
  q = qkv[:, :gw]             # 1/sqrt(head_dim) folded into wq/bq on the host
  k = qkv[:, gw:2 * gw]
  v = qkv[:, 2 * gw:]

  cos = cos_ref[...]                                            # (S, hd) f32
  sin = sin_ref[...]

  def rope(t):                # t*cos + rotate_half(t)*sin (slice + concat, XLU)
    t_rot = jnp.concatenate([-t[:, half:], t[:, :half]], axis=-1)
    return t * cos + t_rot * sin

  # ---- attention per head within the group (small static loop) ----
  outs = []
  for i in range(group):
    lo = i * head_dim
    q_h = rope(q[:, lo:lo + head_dim])
    k_h = rope(k[:, lo:lo + head_dim])
    v_h = v[:, lo:lo + head_dim]
    s = jax.lax.dot_general(q_h.astype(cdt), k_h.astype(cdt),
                            (((1,), (1,)), ((), ())),
                            preferred_element_type=jnp.float32)   # (S, S) f32
    if causal:
      row = jax.lax.broadcasted_iota(jnp.int32, s.shape, 0)
      col = jax.lax.broadcasted_iota(jnp.int32, s.shape, 1)
      s = jnp.where(row >= col, s, -1e9)                          # single select
    s = s - jnp.max(s, axis=-1, keepdims=True)
    p = jnp.exp(s)
    p = p * pl.reciprocal(jnp.sum(p, axis=-1, keepdims=True), approx=True)
    outs.append(jnp.dot(p.astype(cdt), v_h.astype(cdt),
                        preferred_element_type=jnp.float32))      # (S, hd) f32

  out_g = outs[0] if group == 1 else jnp.concatenate(outs, axis=-1)  # (S, gw)

  # ---- fused output projection for the group: K = gw fills the MXU ----
  acc_sc[...] += jnp.dot(out_g.astype(cdt), wo_ref[...],
                         preferred_element_type=jnp.float32)      # (S, D) f32

  # ---- epilogue (last group): first residual ----
  @pl.when(g == num_groups - 1)
  def _final():
    h_ref[...] = (acc_sc[...] + x_ref[...]).astype(h_ref.dtype)


# -------------------------------- FFN kernel ----------------------------------
def ffn_kernel(h_ref, w12_ref, b12_ref, w3_ref, b3_ref, y_ref, hn_sc, acc_sc,
               *, n_chunks, chunk, eps):
  c = pl.program_id(1)
  cdt = w12_ref.dtype

  # ---- per-batch prologue: ffn_norm(h) (bf16 scratch) + acc init (b3) ----
  @pl.when(c == 0)
  def _init():
    h = h_ref[...]                                              # (S, D) f32
    ms = jnp.mean(h * h, axis=-1, keepdims=True)
    hn_sc[...] = (h * jax.lax.rsqrt(ms + eps)).astype(hn_sc.dtype)
    acc_sc[...] = jnp.broadcast_to(b3_ref[...], acc_sc.shape).astype(jnp.float32)

  hn = hn_sc[...]                                               # (S, D) bf16

  # ---- streamed SwiGLU chunk: fused w1|w2 slab, then w3 slab accumulation ----
  f12 = jnp.dot(hn, w12_ref[...],
                preferred_element_type=jnp.float32) + b12_ref[...]   # (S, 2*chunk)
  f1 = f12[:, :chunk]
  f2 = f12[:, chunk:]
  f3 = f1 * (f2 * jax.nn.sigmoid(f2))                           # f1 * SiLU(f2), f32
  acc_sc[...] += jnp.dot(f3.astype(cdt), w3_ref[...],
                         preferred_element_type=jnp.float32)    # (S, D) f32

  # ---- epilogue (last chunk): second residual ----
  @pl.when(c == n_chunks - 1)
  def _final():
    y_ref[...] = (acc_sc[...] + h_ref[...]).astype(y_ref.dtype)


# --------------------------------- wrapper ------------------------------------
def _pick_head_group(num_head, head_dim, target=256):
  """Largest divisor G of num_head with G*head_dim <= target (MXU width)."""
  g = 1
  for cand in range(1, num_head + 1):
    if num_head % cand == 0 and cand * head_dim <= target:
      g = cand
  return g


def _pick_ffn_chunk(hidden):
  for c in (512, 256, 128):
    if hidden >= c and hidden % c == 0:
      return c
  return hidden   # TODO(synk): pad hidden to a multiple of 128 instead of one slab


def transformer_block(x, cos, sin, params, num_head, eps=1e-6,
                      compute_dtype=jnp.bfloat16, causal=True):
  B, S, D = x.shape
  head_dim = D // num_head
  hidden = params["w1"].shape[1]
  cd = compute_dtype

  # ---- head grouping (G*head_dim ~ 256 to fill v6e/v7x MXU columns) ----
  group = _pick_head_group(num_head, head_dim)
  ng = num_head // group
  gw = group * head_dim

  # ---- host-side weight prep: bf16 weights, f32 biases ----
  scale = 1.0 / math.sqrt(head_dim)          # folded into wq/bq (RoPE is linear)
  wq = (params["wq"] * scale).reshape(D, ng, gw).transpose(1, 0, 2)
  wk = params["wk"].reshape(D, ng, gw).transpose(1, 0, 2)
  wv = params["wv"].reshape(D, ng, gw).transpose(1, 0, 2)
  wqkv = jnp.concatenate([wq, wk, wv], axis=-1).astype(cd)        # (ng, D, 3*gw)
  bq = (params["bq"] * scale).reshape(1, ng, gw).transpose(1, 0, 2)
  bk = params["bk"].reshape(1, ng, gw).transpose(1, 0, 2)
  bv = params["bv"].reshape(1, ng, gw).transpose(1, 0, 2)
  bqkv = jnp.concatenate([bq, bk, bv], axis=-1).astype(jnp.float32)  # (ng, 1, 3*gw)
  wo = params["wo"].reshape(ng, gw, D).astype(cd)                 # (ng, gw, D)
  bo = params["bo"].astype(jnp.float32)                           # (1, D)

  chunk = _pick_ffn_chunk(hidden)
  nc = hidden // chunk
  w1b = params["w1"].reshape(D, nc, chunk).transpose(1, 0, 2)
  w2b = params["w2"].reshape(D, nc, chunk).transpose(1, 0, 2)
  w12 = jnp.concatenate([w1b, w2b], axis=-1).astype(cd)           # (nc, D, 2*chunk)
  b1b = params["b1"].reshape(1, nc, chunk).transpose(1, 0, 2)
  b2b = params["b2"].reshape(1, nc, chunk).transpose(1, 0, 2)
  b12 = jnp.concatenate([b1b, b2b], axis=-1).astype(jnp.float32)  # (nc, 1, 2*chunk)
  w3b = params["w3"].reshape(nc, chunk, D).astype(cd)             # (nc, chunk, D)
  b3 = params["b3"].astype(jnp.float32)                           # (1, D)

  cp = pltpu.CompilerParams(dimension_semantics=("parallel", "arbitrary"),
                            vmem_limit_bytes=_VMEM_LIMIT)

  # ---------- pass 1: attention_norm + attention(+RoPE) + first residual ----------
  attn = functools.partial(attention_kernel, num_groups=ng, group=group,
                           head_dim=head_dim, eps=eps, causal=causal)
  h = pl.pallas_call(
      attn,
      out_shape=jax.ShapeDtypeStruct((B, S, D), jnp.float32),
      grid_spec=pltpu.PrefetchScalarGridSpec(
          num_scalar_prefetch=0,
          grid=(B, ng),
          in_specs=[
              pl.BlockSpec((None, S, D), lambda b, g: (b, 0, 0)),        # x
              pl.BlockSpec((S, head_dim), lambda b, g: (0, 0)),          # cos
              pl.BlockSpec((S, head_dim), lambda b, g: (0, 0)),          # sin
              pl.BlockSpec((None, D, 3 * gw), lambda b, g: (g, 0, 0)),   # wq|wk|wv
              pl.BlockSpec((None, 1, 3 * gw), lambda b, g: (g, 0, 0)),   # bq|bk|bv
              pl.BlockSpec((None, gw, D), lambda b, g: (g, 0, 0)),       # wo
              pl.BlockSpec((1, D), lambda b, g: (0, 0)),                 # bo
          ],
          out_specs=pl.BlockSpec((None, S, D), lambda b, g: (b, 0, 0)),
          scratch_shapes=[pltpu.VMEM((S, D), cd),              # RMSNorm(x), bf16
                          pltpu.VMEM((S, D), jnp.float32)]),   # attn accumulator
      compiler_params=cp,
  )(x, cos, sin, wqkv, bqkv, wo, bo)

  # ---------- pass 2: ffn_norm + SwiGLU FFN (streamed weights) + residual ----------
  ffn = functools.partial(ffn_kernel, n_chunks=nc, chunk=chunk, eps=eps)
  y = pl.pallas_call(
      ffn,
      out_shape=jax.ShapeDtypeStruct((B, S, D), x.dtype),
      grid_spec=pltpu.PrefetchScalarGridSpec(
          num_scalar_prefetch=0,
          grid=(B, nc),
          in_specs=[
              pl.BlockSpec((None, S, D), lambda b, c: (b, 0, 0)),         # h
              pl.BlockSpec((None, D, 2 * chunk), lambda b, c: (c, 0, 0)), # w1|w2
              pl.BlockSpec((None, 1, 2 * chunk), lambda b, c: (c, 0, 0)), # b1|b2
              pl.BlockSpec((None, chunk, D), lambda b, c: (c, 0, 0)),     # w3
              pl.BlockSpec((1, D), lambda b, c: (0, 0)),                  # b3
          ],
          out_specs=pl.BlockSpec((None, S, D), lambda b, c: (b, 0, 0)),
          scratch_shapes=[pltpu.VMEM((S, D), cd),              # RMSNorm(h), bf16
                          pltpu.VMEM((S, D), jnp.float32)]),   # FFN accumulator
      compiler_params=cp,
  )(h, w12, b12, w3b, b3)
  return y


# ----------------------- pure-JAX reference (for sanity check) -----------------------
def reference_block(x, cos, sin, mask, p, num_head, eps=1e-6):
  B, S, D = x.shape
  hd = D // num_head

  def rms(z):
    return z * jax.lax.rsqrt(jnp.mean(z * z, axis=-1, keepdims=True) + eps)

  def rotate_half(z):
    z1, z2 = z[..., : hd // 2], z[..., hd // 2:]
    return jnp.concatenate([-z2, z1], axis=-1)

  xn = rms(x)
  q = xn @ p["wq"] + p["bq"][0]
  k = xn @ p["wk"] + p["bk"][0]
  v = xn @ p["wv"] + p["bv"][0]
  q = q.reshape(B, S, num_head, hd).transpose(0, 2, 1, 3)
  k = k.reshape(B, S, num_head, hd).transpose(0, 2, 1, 3)
  v = v.reshape(B, S, num_head, hd).transpose(0, 2, 1, 3)
  cos_b = cos[None, None]
  sin_b = sin[None, None]
  q = q * cos_b + rotate_half(q) * sin_b
  k = k * cos_b + rotate_half(k) * sin_b
  scores = jnp.einsum("bhqd,bhkd->bhqk", q, k) / math.sqrt(hd) + mask[None, None]
  attn = jax.nn.softmax(scores, axis=-1)
  out = jnp.einsum("bhqk,bhkd->bhqd", attn, v)
  out = out.transpose(0, 2, 1, 3).reshape(B, S, D)
  h = out @ p["wo"] + p["bo"][0] + x
  hn = rms(h)
  f1 = hn @ p["w1"] + p["b1"][0]
  f2 = hn @ p["w2"] + p["b2"][0]
  y = (f1 * jax.nn.silu(f2)) @ p["w3"] + p["b3"][0]
  return y + h


if __name__ == "__main__":
  B, S, D, H = 2, 8, 32, 4
  hd = D // H
  hidden = 4 * D

  key = jax.random.PRNGKey(0)
  ks = jax.random.split(key, 16)

  def w(k, shape, scale=0.05):
    return (scale * jax.random.normal(k, shape)).astype(jnp.float32)

  params = {
      "wq": w(ks[0], (D, D)),  "bq": w(ks[1], (1, D), 0.01),
      "wk": w(ks[2], (D, D)),  "bk": w(ks[3], (1, D), 0.01),
      "wv": w(ks[4], (D, D)),  "bv": w(ks[5], (1, D), 0.01),
      "wo": w(ks[6], (D, D)),  "bo": w(ks[7], (1, D), 0.01),
      "w1": w(ks[8], (D, hidden)),  "b1": w(ks[9], (1, hidden), 0.01),
      "w2": w(ks[10], (D, hidden)), "b2": w(ks[11], (1, hidden), 0.01),
      "w3": w(ks[12], (hidden, D)), "b3": w(ks[13], (1, D), 0.01),
  }

  x = jax.random.normal(ks[14], (B, S, D), dtype=jnp.float32)

  # RoPE tables (HF-style: duplicated halves), shape (S, head_dim)
  inv_freq = 1.0 / (10000.0 ** (jnp.arange(0, hd // 2, dtype=jnp.float32) * 2.0 / hd))
  ang = jnp.arange(S, dtype=jnp.float32)[:, None] * inv_freq[None, :]   # (S, hd/2)
  cos = jnp.concatenate([jnp.cos(ang), jnp.cos(ang)], axis=-1)
  sin = jnp.concatenate([jnp.sin(ang), jnp.sin(ang)], axis=-1)

  y = transformer_block(x, cos, sin, params, num_head=H)
  y = jax.block_until_ready(y)

  # causal mask for the reference (the kernel builds the same mask in-kernel)
  mask = jnp.where(jnp.arange(S)[:, None] >= jnp.arange(S)[None, :],
                   0.0, -1e9).astype(jnp.float32)
  with jax.default_matmul_precision("float32"):
    y_ref = reference_block(x, cos, sin, mask, params, num_head=H)

  err = float(jnp.max(jnp.abs(y - y_ref)))
  assert err < 2e-2, f"mismatch vs reference: max abs err = {err}"

  # TODO(synk): kvcache update path, return_attn=True output, and arbitrary
  # user-supplied additive masks are not exercised (forward here corresponds to
  # kvcache=None, return_attn=False, causal mask).
  print("KERNEL_OK")
</pallas_src>

<mosaic_0001>
module attributes {stable_mosaic.version = 11 : i64} {
  func.func @attention_kernel(%arg0: i32, %arg1: i32, %arg2: memref<1x8x32xf32, #tpu.memory_space<vmem>>, %arg3: memref<8x8xf32, #tpu.memory_space<vmem>>, %arg4: memref<8x8xf32, #tpu.memory_space<vmem>>, %arg5: memref<1x32x96xbf16, #tpu.memory_space<vmem>>, %arg6: memref<1x1x96xf32, #tpu.memory_space<vmem>>, %arg7: memref<1x32x32xbf16, #tpu.memory_space<vmem>>, %arg8: memref<1x32xf32, #tpu.memory_space<vmem>>, %arg9: memref<1x8x32xf32, #tpu.memory_space<vmem>>, %arg10: memref<8x32xbf16, #tpu.memory_space<vmem>>, %arg11: memref<8x32xf32, #tpu.memory_space<vmem>>) attributes {dimension_semantics = [#tpu.dimension_semantics<parallel>, #tpu.dimension_semantics<arbitrary>], iteration_bounds = array<i64: 2, 1>, scalar_prefetch = 0 : i64, scratch_operands = 2 : i64, tpu.core_type = #tpu.core_type<tc>, window_params = [{transform_indices = @transform_0, window_bounds = array<i64: 1, 8, 32>}, {pipeline_mode = #tpu.pipeline_mode<synchronous>, transform_indices = @transform_1, window_bounds = array<i64: 8, 8>}, {pipeline_mode = #tpu.pipeline_mode<synchronous>, transform_indices = @transform_2, window_bounds = array<i64: 8, 8>}, {transform_indices = @transform_3, window_bounds = array<i64: 1, 32, 96>}, {transform_indices = @transform_4, window_bounds = array<i64: 1, 1, 96>}, {transform_indices = @transform_5, window_bounds = array<i64: 1, 32, 32>}, {pipeline_mode = #tpu.pipeline_mode<synchronous>, transform_indices = @transform_6, window_bounds = array<i64: 1, 32>}, {transform_indices = @transform_7, window_bounds = array<i64: 1, 8, 32>}]} {
    %c0_i32 = arith.constant 0 : i32
    %0 = arith.cmpi eq, %arg1, %c0_i32 : i32
    %1 = arith.extui %0 : i1 to i32
    %c0_i32_0 = arith.constant 0 : i32
    %2 = arith.cmpi ne, %1, %c0_i32_0 : i32
    scf.if %2 {
      %c0_50 = arith.constant 0 : index
      %c0_51 = arith.constant 0 : index
      %c0_52 = arith.constant 0 : index
      %187 = vector.load %arg2[%c0_50, %c0_51, %c0_52] : memref<1x8x32xf32, #tpu.memory_space<vmem>>, vector<1x8x32xf32>
      %188 = vector.shape_cast %187 : vector<1x8x32xf32> to vector<8x32xf32>
      %189 = arith.mulf %188, %188 : vector<8x32xf32>
      %cst_53 = arith.constant dense<0.000000e+00> : vector<8xf32>
      %190 = vector.multi_reduction <add>, %189, %cst_53 [1] : vector<8x32xf32> to vector<8xf32>
      %191 = vector.shape_cast %190 : vector<8xf32> to vector<8x1xf32>
      %cst_54 = arith.constant 3.200000e+01 : f32
      %192 = vector.broadcast %cst_54 : f32 to vector<8x1xf32>
      %193 = arith.divf %191, %192 : vector<8x1xf32>
      %cst_55 = arith.constant 9.99999997E-7 : f32
      %194 = vector.broadcast %cst_55 : f32 to vector<8x1xf32>
      %195 = arith.addf %193, %194 : vector<8x1xf32>
      %196 = math.rsqrt %195 : vector<8x1xf32>
      %197 = vector.broadcast %196 : vector<8x1xf32> to vector<8x32xf32>
      %198 = arith.mulf %188, %197 : vector<8x32xf32>
      %199 = arith.truncf %198 : vector<8x32xf32> to vector<8x32xbf16>
      %c0_56 = arith.constant 0 : index
      %c0_57 = arith.constant 0 : index
      %200 = vector.load %arg10[%c0_56, %c0_57] : memref<8x32xbf16, #tpu.memory_space<vmem>>, vector<8x32xbf16>
      tpu.vector_store %arg10[%c0_56, %c0_57], %199 {strides = array<i32>} : memref<8x32xbf16, #tpu.memory_space<vmem>>, vector<8x32xbf16>,
      %c0_58 = arith.constant 0 : index
      %c0_59 = arith.constant 0 : index
      %201 = vector.load %arg8[%c0_58, %c0_59] : memref<1x32xf32, #tpu.memory_space<vmem>>, vector<1x32xf32>
      %202 = vector.shape_cast %201 : vector<1x32xf32> to vector<1x32xf32>
      %203 = vector.broadcast %202 : vector<1x32xf32> to vector<8x32xf32>
      %c0_60 = arith.constant 0 : index
      %c0_61 = arith.constant 0 : index
      %204 = vector.load %arg11[%c0_60, %c0_61] : memref<8x32xf32, #tpu.memory_space<vmem>>, vector<8x32xf32>
      tpu.vector_store %arg11[%c0_60, %c0_61], %203 {strides = array<i32>} : memref<8x32xf32, #tpu.memory_space<vmem>>, vector<8x32xf32>,
    } else {
    }
    %c0 = arith.constant 0 : index
    %c0_1 = arith.constant 0 : index
    %3 = vector.load %arg10[%c0, %c0_1] : memref<8x32xbf16, #tpu.memory_space<vmem>>, vector<8x32xbf16>
    %c0_2 = arith.constant 0 : index
    %c0_3 = arith.constant 0 : index
    %c0_4 = arith.constant 0 : index
    %4 = vector.load %arg5[%c0_2, %c0_3, %c0_4] : memref<1x32x96xbf16, #tpu.memory_space<vmem>>, vector<1x32x96xbf16>
    %5 = vector.shape_cast %4 : vector<1x32x96xbf16> to vector<32x96xbf16>
    %cst = arith.constant dense<0.000000e+00> : vector<8x96xf32>
    %6 = tpu.matmul %3, %5, %cst {dimension_numbers = #tpu.dot_dimension_numbers<[1], [0], [0], [1], [0, 0, 1, 1], [], []>} : vector<8x32xbf16>, vector<32x96xbf16>, vector<8x96xf32> -> vector<8x96xf32>
    %c0_5 = arith.constant 0 : index
    %c0_6 = arith.constant 0 : index
    %c0_7 = arith.constant 0 : index
    %7 = vector.load %arg6[%c0_5, %c0_6, %c0_7] : memref<1x1x96xf32, #tpu.memory_space<vmem>>, vector<1x1x96xf32>
    %8 = vector.shape_cast %7 : vector<1x1x96xf32> to vector<1x96xf32>
    %9 = vector.broadcast %8 : vector<1x96xf32> to vector<8x96xf32>
    %10 = arith.addf %6, %9 : vector<8x96xf32>
    %11 = vector.extract_strided_slice %10 {offsets = [0, 0], sizes = [8, 32], strides = [1, 1]} : vector<8x96xf32> to vector<8x32xf32>
    %12 = vector.extract_strided_slice %10 {offsets = [0, 32], sizes = [8, 32], strides = [1, 1]} : vector<8x96xf32> to vector<8x32xf32>
    %13 = vector.extract_strided_slice %10 {offsets = [0, 64], sizes = [8, 32], strides = [1, 1]} : vector<8x96xf32> to vector<8x32xf32>
    %c0_8 = arith.constant 0 : index
    %c0_9 = arith.constant 0 : index
    %14 = vector.load %arg3[%c0_8, %c0_9] : memref<8x8xf32, #tpu.memory_space<vmem>>, vector<8x8xf32>
    %c0_10 = arith.constant 0 : index
    %c0_11 = arith.constant 0 : index
    %15 = vector.load %arg4[%c0_10, %c0_11] : memref<8x8xf32, #tpu.memory_space<vmem>>, vector<8x8xf32>
    %16 = vector.extract_strided_slice %11 {offsets = [0, 0], sizes = [8, 8], strides = [1, 1]} : vector<8x32xf32> to vector<8x8xf32>
    %17 = vector.extract_strided_slice %16 {offsets = [0, 4], sizes = [8, 4], strides = [1, 1]} : vector<8x8xf32> to vector<8x4xf32>
    %cst_12 = arith.constant 0.000000e+00 : f32
    %18 = vector.broadcast %cst_12 : f32 to vector<8x4xf32>
    %19 = arith.subf %18, %17 : vector<8x4xf32>
    %20 = vector.extract_strided_slice %16 {offsets = [0, 0], sizes = [8, 4], strides = [1, 1]} : vector<8x8xf32> to vector<8x4xf32>
    %21 = tpu.concatenate %19, %20 in 1 : vector<8x4xf32>, vector<8x4xf32> -> vector<8x8xf32>
    %22 = arith.mulf %16, %14 : vector<8x8xf32>
    %23 = arith.mulf %21, %15 : vector<8x8xf32>
    %24 = arith.addf %22, %23 : vector<8x8xf32>
    %25 = vector.extract_strided_slice %12 {offsets = [0, 0], sizes = [8, 8], strides = [1, 1]} : vector<8x32xf32> to vector<8x8xf32>
    %26 = vector.extract_strided_slice %25 {offsets = [0, 4], sizes = [8, 4], strides = [1, 1]} : vector<8x8xf32> to vector<8x4xf32>
    %cst_13 = arith.constant 0.000000e+00 : f32
    %27 = vector.broadcast %cst_13 : f32 to vector<8x4xf32>
    %28 = arith.subf %27, %26 : vector<8x4xf32>
    %29 = vector.extract_strided_slice %25 {offsets = [0, 0], sizes = [8, 4], strides = [1, 1]} : vector<8x8xf32> to vector<8x4xf32>
    %30 = tpu.concatenate %28, %29 in 1 : vector<8x4xf32>, vector<8x4xf32> -> vector<8x8xf32>
    %31 = arith.mulf %25, %14 : vector<8x8xf32>
    %32 = arith.mulf %30, %15 : vector<8x8xf32>
    %33 = arith.addf %31, %32 : vector<8x8xf32>
    %34 = vector.extract_strided_slice %13 {offsets = [0, 0], sizes = [8, 8], strides = [1, 1]} : vector<8x32xf32> to vector<8x8xf32>
    %35 = arith.truncf %24 : vector<8x8xf32> to vector<8x8xbf16>
    %36 = arith.truncf %33 : vector<8x8xf32> to vector<8x8xbf16>
    %cst_14 = arith.constant dense<0.000000e+00> : vector<8x8xf32>
    %37 = tpu.matmul %35, %36, %cst_14 {dimension_numbers = #tpu.dot_dimension_numbers<[1], [1], [0], [0], [0, 0, 1, 0], [], []>} : vector<8x8xbf16>, vector<8x8xbf16>, vector<8x8xf32> -> vector<8x8xf32>
    %38 = tpu.iota {dimensions = array<i32: 0>} : vector<8x8xi32>
    %39 = tpu.iota {dimensions = array<i32: 1>} : vector<8x8xi32>
    %40 = arith.cmpi sge, %38, %39 : vector<8x8xi32>
    %cst_15 = arith.constant -1.000000e+09 : f32
    %41 = vector.broadcast %cst_15 : f32 to vector<8x8xf32>
    %42 = arith.select %40, %37, %41 : vector<8x8xi1>, vector<8x8xf32>
    %cst_16 = arith.constant dense<0xFF800000> : vector<8xf32>
    %43 = vector.multi_reduction <maximumf>, %42, %cst_16 [1] : vector<8x8xf32> to vector<8xf32>
    %44 = vector.shape_cast %43 : vector<8xf32> to vector<8x1xf32>
    %45 = vector.broadcast %44 : vector<8x1xf32> to vector<8x8xf32>
    %46 = arith.subf %42, %45 : vector<8x8xf32>
    %47 = math.exp %46 : vector<8x8xf32>
    %cst_17 = arith.constant dense<0.000000e+00> : vector<8xf32>
    %48 = vector.multi_reduction <add>, %47, %cst_17 [1] : vector<8x8xf32> to vector<8xf32>
    %49 = vector.shape_cast %48 : vector<8xf32> to vector<8x1xf32>
    %50 = tpu.reciprocal %49 {approx = true} : vector<8x1xf32> -> vector<8x1xf32>
    %51 = vector.broadcast %50 : vector<8x1xf32> to vector<8x8xf32>
    %52 = arith.mulf %47, %51 : vector<8x8xf32>
    %53 = arith.truncf %52 : vector<8x8xf32> to vector<8x8xbf16>
    %54 = arith.truncf %34 : vector<8x8xf32> to vector<8x8xbf16>
    %cst_18 = arith.constant dense<0.000000e+00> : vector<8x8xf32>
    %55 = tpu.matmul %53, %54, %cst_18 {dimension_numbers = #tpu.dot_dimension_numbers<[1], [0], [0], [1], [0, 0, 1, 1], [], []>} : vector<8x8xbf16>, vector<8x8xbf16>, vector<8x8xf32> -> vector<8x8xf32>
    %56 = vector.extract_strided_slice %11 {offsets = [0, 8], sizes = [8, 8], strides = [1, 1]} : vector<8x32xf32> to vector<8x8xf32>
    %57 = vector.extract_strided_slice %56 {offsets = [0, 4], sizes = [8, 4], strides = [1, 1]} : vector<8x8xf32> to vector<8x4xf32>
    %cst_19 = arith.constant 0.000000e+00 : f32
    %58 = vector.broadcast %cst_19 : f32 to vector<8x4xf32>
    %59 = arith.subf %58, %57 : vector<8x4xf32>
    %60 = vector.extract_strided_slice %56 {offsets = [0, 0], sizes = [8, 4], strides = [1, 1]} : vector<8x8xf32> to vector<8x4xf32>
    %61 = tpu.concatenate %59, %60 in 1 : vector<8x4xf32>, vector<8x4xf32> -> vector<8x8xf32>
    %62 = arith.mulf %56, %14 : vector<8x8xf32>
    %63 = arith.mulf %61, %15 : vector<8x8xf32>
    %64 = arith.addf %62, %63 : vector<8x8xf32>
    %65 = vector.extract_strided_slice %12 {offsets = [0, 8], sizes = [8, 8], strides = [1, 1]} : vector<8x32xf32> to vector<8x8xf32>
    %66 = vector.extract_strided_slice %65 {offsets = [0, 4], sizes = [8, 4], strides = [1, 1]} : vector<8x8xf32> to vector<8x4xf32>
    %cst_20 = arith.constant 0.000000e+00 : f32
    %67 = vector.broadcast %cst_20 : f32 to vector<8x4xf32>
    %68 = arith.subf %67, %66 : vector<8x4xf32>
    %69 = vector.extract_strided_slice %65 {offsets = [0, 0], sizes = [8, 4], strides = [1, 1]} : vector<8x8xf32> to vector<8x4xf32>
    %70 = tpu.concatenate %68, %69 in 1 : vector<8x4xf32>, vector<8x4xf32> -> vector<8x8xf32>
    %71 = arith.mulf %65, %14 : vector<8x8xf32>
    %72 = arith.mulf %70, %15 : vector<8x8xf32>
    %73 = arith.addf %71, %72 : vector<8x8xf32>
    %74 = vector.extract_strided_slice %13 {offsets = [0, 8], sizes = [8, 8], strides = [1, 1]} : vector<8x32xf32> to vector<8x8xf32>
    %75 = arith.truncf %64 : vector<8x8xf32> to vector<8x8xbf16>
    %76 = arith.truncf %73 : vector<8x8xf32> to vector<8x8xbf16>
    %cst_21 = arith.constant dense<0.000000e+00> : vector<8x8xf32>
    %77 = tpu.matmul %75, %76, %cst_21 {dimension_numbers = #tpu.dot_dimension_numbers<[1], [1], [0], [0], [0, 0, 1, 0], [], []>} : vector<8x8xbf16>, vector<8x8xbf16>, vector<8x8xf32> -> vector<8x8xf32>
    %78 = tpu.iota {dimensions = array<i32: 0>} : vector<8x8xi32>
    %79 = tpu.iota {dimensions = array<i32: 1>} : vector<8x8xi32>
    %80 = arith.cmpi sge, %78, %79 : vector<8x8xi32>
    %cst_22 = arith.constant -1.000000e+09 : f32
    %81 = vector.broadcast %cst_22 : f32 to vector<8x8xf32>
    %82 = arith.select %80, %77, %81 : vector<8x8xi1>, vector<8x8xf32>
    %cst_23 = arith.constant dense<0xFF800000> : vector<8xf32>
    %83 = vector.multi_reduction <maximumf>, %82, %cst_23 [1] : vector<8x8xf32> to vector<8xf32>
    %84 = vector.shape_cast %83 : vector<8xf32> to vector<8x1xf32>
    %85 = vector.broadcast %84 : vector<8x1xf32> to vector<8x8xf32>
    %86 = arith.subf %82, %85 : vector<8x8xf32>
    %87 = math.exp %86 : vector<8x8xf32>
    %cst_24 = arith.constant dense<0.000000e+00> : vector<8xf32>
    %88 = vector.multi_reduction <add>, %87, %cst_24 [1] : vector<8x8xf32> to vector<8xf32>
    %89 = vector.shape_cast %88 : vector<8xf32> to vector<8x1xf32>
    %90 = tpu.reciprocal %89 {approx = true} : vector<8x1xf32> -> vector<8x1xf32>
    %91 = vector.broadcast %90 : vector<8x1xf32> to vector<8x8xf32>
    %92 = arith.mulf %87, %91 : vector<8x8xf32>
    %93 = arith.truncf %92 : vector<8x8xf32> to vector<8x8xbf16>
    %94 = arith.truncf %74 : vector<8x8xf32> to vector<8x8xbf16>
    %cst_25 = arith.constant dense<0.000000e+00> : vector<8x8xf32>
    %95 = tpu.matmul %93, %94, %cst_25 {dimension_numbers = #tpu.dot_dimension_numbers<[1], [0], [0], [1], [0, 0, 1, 1], [], []>} : vector<8x8xbf16>, vector<8x8xbf16>, vector<8x8xf32> -> vector<8x8xf32>
    %96 = vector.extract_strided_slice %11 {offsets = [0, 16], sizes = [8, 8], strides = [1, 1]} : vector<8x32xf32> to vector<8x8xf32>
    %97 = vector.extract_strided_slice %96 {offsets = [0, 4], sizes = [8, 4], strides = [1, 1]} : vector<8x8xf32> to vector<8x4xf32>
    %cst_26 = arith.constant 0.000000e+00 : f32
    %98 = vector.broadcast %cst_26 : f32 to vector<8x4xf32>
    %99 = arith.subf %98, %97 : vector<8x4xf32>
    %100 = vector.extract_strided_slice %96 {offsets = [0, 0], sizes = [8, 4], strides = [1, 1]} : vector<8x8xf32> to vector<8x4xf32>
    %101 = tpu.concatenate %99, %100 in 1 : vector<8x4xf32>, vector<8x4xf32> -> vector<8x8xf32>
    %102 = arith.mulf %96, %14 : vector<8x8xf32>
    %103 = arith.mulf %101, %15 : vector<8x8xf32>
    %104 = arith.addf %102, %103 : vector<8x8xf32>
    %105 = vector.extract_strided_slice %12 {offsets = [0, 16], sizes = [8, 8], strides = [1, 1]} : vector<8x32xf32> to vector<8x8xf32>
    %106 = vector.extract_strided_slice %105 {offsets = [0, 4], sizes = [8, 4], strides = [1, 1]} : vector<8x8xf32> to vector<8x4xf32>
    %cst_27 = arith.constant 0.000000e+00 : f32
    %107 = vector.broadcast %cst_27 : f32 to vector<8x4xf32>
    %108 = arith.subf %107, %106 : vector<8x4xf32>
    %109 = vector.extract_strided_slice %105 {offsets = [0, 0], sizes = [8, 4], strides = [1, 1]} : vector<8x8xf32> to vector<8x4xf32>
    %110 = tpu.concatenate %108, %109 in 1 : vector<8x4xf32>, vector<8x4xf32> -> vector<8x8xf32>
    %111 = arith.mulf %105, %14 : vector<8x8xf32>
    %112 = arith.mulf %110, %15 : vector<8x8xf32>
    %113 = arith.addf %111, %112 : vector<8x8xf32>
    %114 = vector.extract_strided_slice %13 {offsets = [0, 16], sizes = [8, 8], strides = [1, 1]} : vector<8x32xf32> to vector<8x8xf32>
    %115 = arith.truncf %104 : vector<8x8xf32> to vector<8x8xbf16>
    %116 = arith.truncf %113 : vector<8x8xf32> to vector<8x8xbf16>
    %cst_28 = arith.constant dense<0.000000e+00> : vector<8x8xf32>
    %117 = tpu.matmul %115, %116, %cst_28 {dimension_numbers = #tpu.dot_dimension_numbers<[1], [1], [0], [0], [0, 0, 1, 0], [], []>} : vector<8x8xbf16>, vector<8x8xbf16>, vector<8x8xf32> -> vector<8x8xf32>
    %118 = tpu.iota {dimensions = array<i32: 0>} : vector<8x8xi32>
    %119 = tpu.iota {dimensions = array<i32: 1>} : vector<8x8xi32>
    %120 = arith.cmpi sge, %118, %119 : vector<8x8xi32>
    %cst_29 = arith.constant -1.000000e+09 : f32
    %121 = vector.broadcast %cst_29 : f32 to vector<8x8xf32>
    %122 = arith.select %120, %117, %121 : vector<8x8xi1>, vector<8x8xf32>
    %cst_30 = arith.constant dense<0xFF800000> : vector<8xf32>
    %123 = vector.multi_reduction <maximumf>, %122, %cst_30 [1] : vector<8x8xf32> to vector<8xf32>
    %124 = vector.shape_cast %123 : vector<8xf32> to vector<8x1xf32>
    %125 = vector.broadcast %124 : vector<8x1xf32> to vector<8x8xf32>
    %126 = arith.subf %122, %125 : vector<8x8xf32>
    %127 = math.exp %126 : vector<8x8xf32>
    %cst_31 = arith.constant dense<0.000000e+00> : vector<8xf32>
    %128 = vector.multi_reduction <add>, %127, %cst_31 [1] : vector<8x8xf32> to vector<8xf32>
    %129 = vector.shape_cast %128 : vector<8xf32> to vector<8x1xf32>
    %130 = tpu.reciprocal %129 {approx = true} : vector<8x1xf32> -> vector<8x1xf32>
    %131 = vector.broadcast %130 : vector<8x1xf32> to vector<8x8xf32>
    %132 = arith.mulf %127, %131 : vector<8x8xf32>
    %133 = arith.truncf %132 : vector<8x8xf32> to vector<8x8xbf16>
    %134 = arith.truncf %114 : vector<8x8xf32> to vector<8x8xbf16>
    %cst_32 = arith.constant dense<0.000000e+00> : vector<8x8xf32>
    %135 = tpu.matmul %133, %134, %cst_32 {dimension_numbers = #tpu.dot_dimension_numbers<[1], [0], [0], [1], [0, 0, 1, 1], [], []>} : vector<8x8xbf16>, vector<8x8xbf16>, vector<8x8xf32> -> vector<8x8xf32>
    %136 = vector.extract_strided_slice %11 {offsets = [0, 24], sizes = [8, 8], strides = [1, 1]} : vector<8x32xf32> to vector<8x8xf32>
    %137 = vector.extract_strided_slice %136 {offsets = [0, 4], sizes = [8, 4], strides = [1, 1]} : vector<8x8xf32> to vector<8x4xf32>
    %cst_33 = arith.constant 0.000000e+00 : f32
    %138 = vector.broadcast %cst_33 : f32 to vector<8x4xf32>
    %139 = arith.subf %138, %137 : vector<8x4xf32>
    %140 = vector.extract_strided_slice %136 {offsets = [0, 0], sizes = [8, 4], strides = [1, 1]} : vector<8x8xf32> to vector<8x4xf32>
    %141 = tpu.concatenate %139, %140 in 1 : vector<8x4xf32>, vector<8x4xf32> -> vector<8x8xf32>
    %142 = arith.mulf %136, %14 : vector<8x8xf32>
    %143 = arith.mulf %141, %15 : vector<8x8xf32>
    %144 = arith.addf %142, %143 : vector<8x8xf32>
    %145 = vector.extract_strided_slice %12 {offsets = [0, 24], sizes = [8, 8], strides = [1, 1]} : vector<8x32xf32> to vector<8x8xf32>
    %146 = vector.extract_strided_slice %145 {offsets = [0, 4], sizes = [8, 4], strides = [1, 1]} : vector<8x8xf32> to vector<8x4xf32>
    %cst_34 = arith.constant 0.000000e+00 : f32
    %147 = vector.broadcast %cst_34 : f32 to vector<8x4xf32>
    %148 = arith.subf %147, %146 : vector<8x4xf32>
    %149 = vector.extract_strided_slice %145 {offsets = [0, 0], sizes = [8, 4], strides = [1, 1]} : vector<8x8xf32> to vector<8x4xf32>
    %150 = tpu.concatenate %148, %149 in 1 : vector<8x4xf32>, vector<8x4xf32> -> vector<8x8xf32>
    %151 = arith.mulf %145, %14 : vector<8x8xf32>
    %152 = arith.mulf %150, %15 : vector<8x8xf32>
    %153 = arith.addf %151, %152 : vector<8x8xf32>
    %154 = vector.extract_strided_slice %13 {offsets = [0, 24], sizes = [8, 8], strides = [1, 1]} : vector<8x32xf32> to vector<8x8xf32>
    %155 = arith.truncf %144 : vector<8x8xf32> to vector<8x8xbf16>
    %156 = arith.truncf %153 : vector<8x8xf32> to vector<8x8xbf16>
    %cst_35 = arith.constant dense<0.000000e+00> : vector<8x8xf32>
    %157 = tpu.matmul %155, %156, %cst_35 {dimension_numbers = #tpu.dot_dimension_numbers<[1], [1], [0], [0], [0, 0, 1, 0], [], []>} : vector<8x8xbf16>, vector<8x8xbf16>, vector<8x8xf32> -> vector<8x8xf32>
    %158 = tpu.iota {dimensions = array<i32: 0>} : vector<8x8xi32>
    %159 = tpu.iota {dimensions = array<i32: 1>} : vector<8x8xi32>
    %160 = arith.cmpi sge, %158, %159 : vector<8x8xi32>
    %cst_36 = arith.constant -1.000000e+09 : f32
    %161 = vector.broadcast %cst_36 : f32 to vector<8x8xf32>
    %162 = arith.select %160, %157, %161 : vector<8x8xi1>, vector<8x8xf32>
    %cst_37 = arith.constant dense<0xFF800000> : vector<8xf32>
    %163 = vector.multi_reduction <maximumf>, %162, %cst_37 [1] : vector<8x8xf32> to vector<8xf32>
    %164 = vector.shape_cast %163 : vector<8xf32> to vector<8x1xf32>
    %165 = vector.broadcast %164 : vector<8x1xf32> to vector<8x8xf32>
    %166 = arith.subf %162, %165 : vector<8x8xf32>
    %167 = math.exp %166 : vector<8x8xf32>
    %cst_38 = arith.constant dense<0.000000e+00> : vector<8xf32>
    %168 = vector.multi_reduction <add>, %167, %cst_38 [1] : vector<8x8xf32> to vector<8xf32>
    %169 = vector.shape_cast %168 : vector<8xf32> to vector<8x1xf32>
    %170 = tpu.reciprocal %169 {approx = true} : vector<8x1xf32> -> vector<8x1xf32>
    %171 = vector.broadcast %170 : vector<8x1xf32> to vector<8x8xf32>
    %172 = arith.mulf %167, %171 : vector<8x8xf32>
    %173 = arith.truncf %172 : vector<8x8xf32> to vector<8x8xbf16>
    %174 = arith.truncf %154 : vector<8x8xf32> to vector<8x8xbf16>
    %cst_39 = arith.constant dense<0.000000e+00> : vector<8x8xf32>
    %175 = tpu.matmul %173, %174, %cst_39 {dimension_numbers = #tpu.dot_dimension_numbers<[1], [0], [0], [1], [0, 0, 1, 1], [], []>} : vector<8x8xbf16>, vector<8x8xbf16>, vector<8x8xf32> -> vector<8x8xf32>
    %176 = tpu.concatenate %55, %95, %135, %175 in 1 : vector<8x8xf32>, vector<8x8xf32>, vector<8x8xf32>, vector<8x8xf32> -> vector<8x32xf32>
    %c0_40 = arith.constant 0 : index
    %c0_41 = arith.constant 0 : index
    %177 = vector.load %arg11[%c0_40, %c0_41] : memref<8x32xf32, #tpu.memory_space<vmem>>, vector<8x32xf32>
    %178 = arith.truncf %176 : vector<8x32xf32> to vector<8x32xbf16>
    %c0_42 = arith.constant 0 : index
    %c0_43 = arith.constant 0 : index
    %c0_44 = arith.constant 0 : index
    %179 = vector.load %arg7[%c0_42, %c0_43, %c0_44] : memref<1x32x32xbf16, #tpu.memory_space<vmem>>, vector<1x32x32xbf16>
    %180 = vector.shape_cast %179 : vector<1x32x32xbf16> to vector<32x32xbf16>
    %cst_45 = arith.constant dense<0.000000e+00> : vector<8x32xf32>
    %181 = tpu.matmul %178, %180, %cst_45 {dimension_numbers = #tpu.dot_dimension_numbers<[1], [0], [0], [1], [0, 0, 1, 1], [], []>} : vector<8x32xbf16>, vector<32x32xbf16>, vector<8x32xf32> -> vector<8x32xf32>
    %182 = arith.addf %177, %181 : vector<8x32xf32>
    %c0_46 = arith.constant 0 : index
    %c0_47 = arith.constant 0 : index
    %183 = vector.load %arg11[%c0_46, %c0_47] : memref<8x32xf32, #tpu.memory_space<vmem>>, vector<8x32xf32>
    tpu.vector_store %arg11[%c0_46, %c0_47], %182 {strides = array<i32>} : memref<8x32xf32, #tpu.memory_space<vmem>>, vector<8x32xf32>,
    %c0_i32_48 = arith.constant 0 : i32
    %184 = arith.cmpi eq, %arg1, %c0_i32_48 : i32
    %185 = arith.extui %184 : i1 to i32
    %c0_i32_49 = arith.constant 0 : i32
    %186 = arith.cmpi ne, %185, %c0_i32_49 : i32
    scf.if %186 {
      %c0_50 = arith.constant 0 : index
      %c0_51 = arith.constant 0 : index
      %187 = vector.load %arg11[%c0_50, %c0_51] : memref<8x32xf32, #tpu.memory_space<vmem>>, vector<8x32xf32>
      %c0_52 = arith.constant 0 : index
      %c0_53 = arith.constant 0 : index
      %c0_54 = arith.constant 0 : index
      %188 = vector.load %arg2[%c0_52, %c0_53, %c0_54] : memref<1x8x32xf32, #tpu.memory_space<vmem>>, vector<1x8x32xf32>
      %189 = vector.shape_cast %188 : vector<1x8x32xf32> to vector<8x32xf32>
      %190 = arith.addf %187, %189 : vector<8x32xf32>
      %c0_55 = arith.constant 0 : index
      %c0_56 = arith.constant 0 : index
      %c0_57 = arith.constant 0 : index
      %191 = vector.load %arg9[%c0_55, %c0_56, %c0_57] : memref<1x8x32xf32, #tpu.memory_space<vmem>>, vector<1x8x32xf32>
      %192 = vector.shape_cast %191 : vector<1x8x32xf32> to vector<8x32xf32>
      %193 = vector.shape_cast %190 : vector<8x32xf32> to vector<1x8x32xf32>
      tpu.vector_store %arg9[%c0_55, %c0_56, %c0_57], %193 {strides = array<i32>} : memref<1x8x32xf32, #tpu.memory_space<vmem>>, vector<1x8x32xf32>,
    } else {
    }
    return
  }
  func.func @transform_0(%arg0: i32, %arg1: i32) -> (i32, i32, i32) {
    %c0_i32 = arith.constant 0 : i32
    %c0_i32_0 = arith.constant 0 : i32
    %c0_i32_1 = arith.constant 0 : i32
    return %arg0, %c0_i32, %c0_i32_0 : i32, i32, i32
  }
  func.func @transform_1(%arg0: i32, %arg1: i32) -> (i32, i32) {
    %c0_i32 = arith.constant 0 : i32
    %c0_i32_0 = arith.constant 0 : i32
    %c0_i32_1 = arith.constant 0 : i32
    return %c0_i32, %c0_i32_0 : i32, i32
  }
  func.func @transform_2(%arg0: i32, %arg1: i32) -> (i32, i32) {
    %c0_i32 = arith.constant 0 : i32
    %c0_i32_0 = arith.constant 0 : i32
    %c0_i32_1 = arith.constant 0 : i32
    return %c0_i32, %c0_i32_0 : i32, i32
  }
  func.func @transform_3(%arg0: i32, %arg1: i32) -> (i32, i32, i32) {
    %c0_i32 = arith.constant 0 : i32
    %c0_i32_0 = arith.constant 0 : i32
    %c0_i32_1 = arith.constant 0 : i32
    return %arg1, %c0_i32, %c0_i32_0 : i32, i32, i32
  }
  func.func @transform_4(%arg0: i32, %arg1: i32) -> (i32, i32, i32) {
    %c0_i32 = arith.constant 0 : i32
    %c0_i32_0 = arith.constant 0 : i32
    %c0_i32_1 = arith.constant 0 : i32
    return %arg1, %c0_i32, %c0_i32_0 : i32, i32, i32
  }
  func.func @transform_5(%arg0: i32, %arg1: i32) -> (i32, i32, i32) {
    %c0_i32 = arith.constant 0 : i32
    %c0_i32_0 = arith.constant 0 : i32
    %c0_i32_1 = arith.constant 0 : i32
    return %arg1, %c0_i32, %c0_i32_0 : i32, i32, i32
  }
  func.func @transform_6(%arg0: i32, %arg1: i32) -> (i32, i32) {
    %c0_i32 = arith.constant 0 : i32
    %c0_i32_0 = arith.constant 0 : i32
    %c0_i32_1 = arith.constant 0 : i32
    return %c0_i32, %c0_i32_0 : i32, i32
  }
  func.func @transform_7(%arg0: i32, %arg1: i32) -> (i32, i32, i32) {
    %c0_i32 = arith.constant 0 : i32
    %c0_i32_0 = arith.constant 0 : i32
    %c0_i32_1 = arith.constant 0 : i32
    return %arg0, %c0_i32, %c0_i32_0 : i32, i32, i32
  }
}

</mosaic_0001>

<llo_original>
// kernel: tpu_custom_call.1
$region0: #{tpu_custom_call.1}
  #allocation0 [shape = 'u32[]', space=smem, size = 0x4, offset = 0x4, fixed_abs, tag = 'smem constant byte address 0x4 - core index']
  #allocation1 [shape = 'u32[144,128]{1,0:T(1,128)}', space=vmem, size = 0x12000, scoped, tag = 'internal scratch']
  #allocation2 [shape = 'bf16[8,32]{1,0:T(8,128)(2,1)}', space=vmem, size = 0x800, scoped, tag = 'scratch operand']
  #allocation3 [shape = 'f32[8,32]{1,0:T(8,128)}', space=vmem, size = 0x1000, scoped, tag = 'scratch operand']
  %s0 = inlined_call_operand.hbm [shape: f32[2,8,32], index: 0, kind: input, shape index: {}]
  %s1 = inlined_call_operand.hbm [shape: f32[8,8], index: 1, kind: input, shape index: {}]
  %s2 = inlined_call_operand.hbm [shape: f32[8,8], index: 2, kind: input, shape index: {}]
  %s3 = inlined_call_operand.hbm [shape: bf16[1,32,96], index: 3, kind: input, shape index: {}]
  %s4 = inlined_call_operand.vmem [shape: f32[1,1,96], index: 4, kind: input, shape index: {}]
  %s5 = inlined_call_operand.vmem [shape: bf16[1,32,32], index: 5, kind: input, shape index: {}]
  %s6 = inlined_call_operand.vmem [shape: f32[1,32], index: 6, kind: input, shape index: {}]
  %s7 = inlined_call_operand.hbm [shape: f32[2,8,32], index: 7, kind: output, shape index: {}]
  %s8 = sld [smem:[#allocation0]]
  $region85: #{tpu_custom_call.1} parent=0
    _
  %s10 = ssub.s32 1, %s8
  %s11 = scalar_select 0, %s10, %s8
  $region1: #{tpu_custom_call.1} parent=0
    #allocation4 [shape = 'u8[8192]{0}', space=vmem, size = 0x2000, scoped, tag = 'input window, operand 0']
    #allocation5 [shape = 's32[2]{0}', space=sflag, size = 0x8, scoped, tag = 'scoped memory for tpu_custom_call.1']
    #allocation6 [shape = 's32[2]{0}', space=sflag, size = 0x8, scoped, tag = 'scoped memory for tpu_custom_call.1']
    #allocation7 [shape = 'u8[4096]{0}', space=vmem, size = 0x1000, scoped, tag = 'input window, operand 1, single buffered']
    #allocation8 [shape = 's32[1]{0}', space=sflag, size = 0x4, scoped, tag = 'scoped memory for tpu_custom_call.1']
    #allocation9 [shape = 'u8[4096]{0}', space=vmem, size = 0x1000, scoped, tag = 'input window, operand 2, single buffered']
    #allocation10 [shape = 'u8[8192]{0}', space=vmem, size = 0x2000, scoped, tag = 'input window, operand 3, single buffered']
    #allocation11 [shape = 's32[1]{0}', space=sflag, size = 0x4, scoped, tag = 'scoped memory for tpu_custom_call.1']
    #allocation12 [shape = 'u8[8192]{0}', space=vmem, size = 0x2000, scoped, tag = 'output window, operand 0']
    %12 = vsyncpa [#allocation5], 0
    %s13 = scalar_lea.sflag [#allocation5], 1
    %14 = vsyncpa %s13, 0
    %15 = vsyncpa [#allocation8], 0
    %16 = vsyncpa [#allocation11], 0
    %17 = vsyncpa [#allocation6], 0
    %s18 = scalar_lea.sflag [#allocation6], 1
    %19 = vsyncpa %s18, 0
    loop: start=0, step=1, limit=4
    $region2: #{tpu_custom_call.1} parent=1 // loop_pre_header
      _
    $region3: #{tpu_custom_call.1} parent=1 // loop_header
      %s21 = sphi 0, %s25
      %p22 = scmp.ge.s32.totalorder %s21, 4
      %s28 = sphi 0, %s40
      %s29 = sphi 0, %s36
      %s30 = sphi 0, %s28
      %s31 = sphi 0, %s29
      %s32 = sphi 0, %s30
      %s33 = sphi 0, %s31
      %s43 = sphi 0, %s45
      %s46 = sphi 0, %s43
      %s47 = sphi 0, %s46
      %s63 = sphi 0, %s47
      %s67 = sphi 0, %s67
      %s69 = sphi 0, %s67
      %s70 = sphi 0, %s69
      %s84 = sphi 0, %s70
      %s88 = sphi 0, %s88
      %s90 = sphi 0, %s88
      %s91 = sphi 0, %s90
      %s105 = sphi 0, %s91
      %s111 = sphi 0, %s113
      %s114 = sphi 0, %s111
      %s115 = sphi 0, %s114
      %s131 = sphi 0, %s115
      %s137 = sphi 0, %s139
      %s140 = sphi 0, %s137
      %s141 = sphi 0, %s140
      %s157 = sphi 0, %s141
      %s163 = sphi 0, %s165
      %s166 = sphi 0, %s163
      %s167 = sphi 0, %s166
      %s183 = sphi 0, %s167
      %s187 = sphi 0, %s187
      %s189 = sphi 0, %s187
      %s190 = sphi 0, %s189
      %s204 = sphi 0, %s190
      %s210 = sphi 0, %s212
      %s213 = sphi 0, %s210
      %s214 = sphi 0, %s213
      %s230 = sphi 0, %s214
    $region4: #{tpu_custom_call.1} parent=1 // loop_header_branch
      %24 = sbr.rel (%p22) target = $region8
    $region5: #{tpu_custom_call.1} parent=1 // loop_body
      %s26 = ssub.s32 %s21, 1
      %s27 = ssub.s32 %s21, 2
      %s34 = sadd.s32 1, %s29
      %p35 = scmp.ge.s32.totalorder %s34, 1
      %s36 = scalar_select %p35, 0, %s34
      %s37 = sadd.s32 1, %s28
      %s38 = scalar_select %p35, %s37, %s28
      %p39 = scmp.ge.s32.totalorder %s38, 2
      %s40 = scalar_select %p39, 0, %s38
      %s41 = ssub.s32 %s28, %s40
      %p42 = scmp.eq.s32.totalorder %s41, 0
      %s44 = sadd.s32 %s43, 1
      %s45 = scalar_select %p42, %s43, %s44
      %p48 = pneg %p42
      %p49 = scmp.eq.s32.totalorder %s21, 1
      %p50 = por %p48, %p49
      %p51 = scmp.ne.s32.totalorder %s43, %s46
      %p52 = scmp.eq.s32.totalorder %s21, 0
      %p53 = por %p51, %p52
      %p54 = scmp.ne.s32.totalorder %s43, %s46
      %p55 = scmp.eq.s32.totalorder %s26, 1
      %p56 = por %p54, %p55
      %p57 = scmp.ne.s32.totalorder %s46, %s47
      %p58 = scmp.eq.s32.totalorder %s26, 0
      %p59 = por %p57, %p58
      %p60 = scmp.ne.s32.totalorder %s46, %s47
      %p61 = scmp.eq.s32.totalorder %s27, 1
      %p62 = por %p60, %p61
      %p64 = scmp.ne.s32.totalorder %s47, %s63
      %p65 = scmp.eq.s32.totalorder %s27, 0
      %p66 = por %p64, %p65
      %s68 = sadd.s32 %s67, 1
      %p71 = scmp.eq.s32.totalorder %s21, 1
      %p72 = scmp.ne.s32.totalorder %s67, %s69
      %p73 = scmp.eq.s32.totalorder %s21, 0
      %p74 = por %p72, %p73
      %p75 = scmp.ne.s32.totalorder %s67, %s69
      %p76 = scmp.eq.s32.totalorder %s26, 1
      %p77 = por %p75, %p76
      %p78 = scmp.ne.s32.totalorder %s69, %s70
      %p79 = scmp.eq.s32.totalorder %s26, 0
      %p80 = por %p78, %p79
      %p81 = scmp.ne.s32.totalorder %s69, %s70
      %p82 = scmp.eq.s32.totalorder %s27, 1
      %p83 = por %p81, %p82
      %p85 = scmp.ne.s32.totalorder %s70, %s84
      %p86 = scmp.eq.s32.totalorder %s27, 0
      %p87 = por %p85, %p86
      %s89 = sadd.s32 %s88, 1
      %p92 = scmp.eq.s32.totalorder %s21, 1
      %p93 = scmp.ne.s32.totalorder %s88, %s90
      %p94 = scmp.eq.s32.totalorder %s21, 0
      %p95 = por %p93, %p94
      %p96 = scmp.ne.s32.totalorder %s88, %s90
      %p97 = scmp.eq.s32.totalorder %s26, 1
      %p98 = por %p96, %p97
      %p99 = scmp.ne.s32.totalorder %s90, %s91
      %p100 = scmp.eq.s32.totalorder %s26, 0
      %p101 = por %p99, %p100
      %p102 = scmp.ne.s32.totalorder %s90, %s91
      %p103 = scmp.eq.s32.totalorder %s27, 1
      %p104 = por %p102, %p103
      %p106 = scmp.ne.s32.totalorder %s91, %s105
      %p107 = scmp.eq.s32.totalorder %s27, 0
      %p108 = por %p106, %p107
      %s109 = ssub.s32 %s29, %s36
      %p110 = scmp.eq.s32.totalorder %s109, 0
      %s112 = sadd.s32 %s111, 1
      %s113 = scalar_select %p110, %s111, %s112
      %p116 = pneg %p110
      %p117 = scmp.eq.s32.totalorder %s21, 1
      %p118 = por %p116, %p117
      %p119 = scmp.ne.s32.totalorder %s111, %s114
      %p120 = scmp.eq.s32.totalorder %s21, 0
      %p121 = por %p119, %p120
      %p122 = scmp.ne.s32.totalorder %s111, %s114
      %p123 = scmp.eq.s32.totalorder %s26, 1
      %p124 = por %p122, %p123
      %p125 = scmp.ne.s32.totalorder %s114, %s115
      %p126 = scmp.eq.s32.totalorder %s26, 0
      %p127 = por %p125, %p126
      %p128 = scmp.ne.s32.totalorder %s114, %s115
      %p129 = scmp.eq.s32.totalorder %s27, 1
      %p130 = por %p128, %p129
      %p132 = scmp.ne.s32.totalorder %s115, %s131
      %p133 = scmp.eq.s32.totalorder %s27, 0
      %p134 = por %p132, %p133
      %s135 = ssub.s32 %s29, %s36
      %p136 = scmp.eq.s32.totalorder %s135, 0
      %s138 = sadd.s32 %s137, 1
      %s139 = scalar_select %p136, %s137, %s138
      %p142 = pneg %p136
      %p143 = scmp.eq.s32.totalorder %s21, 1
      %p144 = por %p142, %p143
      %p145 = scmp.ne.s32.totalorder %s137, %s140
      %p146 = scmp.eq.s32.totalorder %s21, 0
      %p147 = por %p145, %p146
      %p148 = scmp.ne.s32.totalorder %s137, %s140
      %p149 = scmp.eq.s32.totalorder %s26, 1
      %p150 = por %p148, %p149
      %p151 = scmp.ne.s32.totalorder %s140, %s141
      %p152 = scmp.eq.s32.totalorder %s26, 0
      %p153 = por %p151, %p152
      %p154 = scmp.ne.s32.totalorder %s140, %s141
      %p155 = scmp.eq.s32.totalorder %s27, 1
      %p156 = por %p154, %p155
      %p158 = scmp.ne.s32.totalorder %s141, %s157
      %p159 = scmp.eq.s32.totalorder %s27, 0
      %p160 = por %p158, %p159
      %s161 = ssub.s32 %s29, %s36
      %p162 = scmp.eq.s32.totalorder %s161, 0
      %s164 = sadd.s32 %s163, 1
      %s165 = scalar_select %p162, %s163, %s164
      %p168 = pneg %p162
      %p169 = scmp.eq.s32.totalorder %s21, 1
      %p170 = por %p168, %p169
      %p171 = scmp.ne.s32.totalorder %s163, %s166
      %p172 = scmp.eq.s32.totalorder %s21, 0
      %p173 = por %p171, %p172
      %p174 = scmp.ne.s32.totalorder %s163, %s166
      %p175 = scmp.eq.s32.totalorder %s26, 1
      %p176 = por %p174, %p175
      %p177 = scmp.ne.s32.totalorder %s166, %s167
      %p178 = scmp.eq.s32.totalorder %s26, 0
      %p179 = por %p177, %p178
      %p180 = scmp.ne.s32.totalorder %s166, %s167
      %p181 = scmp.eq.s32.totalorder %s27, 1
      %p182 = por %p180, %p181
      %p184 = scmp.ne.s32.totalorder %s167, %s183
      %p185 = scmp.eq.s32.totalorder %s27, 0
      %p186 = por %p184, %p185
      %s188 = sadd.s32 %s187, 1
      %p191 = scmp.eq.s32.totalorder %s21, 1
      %p192 = scmp.ne.s32.totalorder %s187, %s189
      %p193 = scmp.eq.s32.totalorder %s21, 0
      %p194 = por %p192, %p193
      %p195 = scmp.ne.s32.totalorder %s187, %s189
      %p196 = scmp.eq.s32.totalorder %s26, 1
      %p197 = por %p195, %p196
      %p198 = scmp.ne.s32.totalorder %s189, %s190
      %p199 = scmp.eq.s32.totalorder %s26, 0
      %p200 = por %p198, %p199
      %p201 = scmp.ne.s32.totalorder %s189, %s190
      %p202 = scmp.eq.s32.totalorder %s27, 1
      %p203 = por %p201, %p202
      %p205 = scmp.ne.s32.totalorder %s190, %s204
      %p206 = scmp.eq.s32.totalorder %s27, 0
      %p207 = por %p205, %p206
      %s208 = ssub.s32 %s28, %s40
      %p209 = scmp.eq.s32.totalorder %s208, 0
      %s211 = sadd.s32 %s210, 1
      %s212 = scalar_select %p209, %s210, %s211
      %p215 = pneg %p209
      %p216 = scmp.eq.s32.totalorder %s21, 1
      %p217 = por %p215, %p216
      %p218 = scmp.ne.s32.totalorder %s210, %s213
      %p219 = scmp.eq.s32.totalorder %s21, 0
      %p220 = por %p218, %p219
      %p221 = scmp.ne.s32.totalorder %s210, %s213
      %p222 = scmp.eq.s32.totalorder %s26, 1
      %p223 = por %p221, %p222
      %p224 = scmp.ne.s32.totalorder %s213, %s214
      %p225 = scmp.eq.s32.totalorder %s26, 0
      %p226 = por %p224, %p225
      %p227 = scmp.ne.s32.totalorder %s213, %s214
      %p228 = scmp.eq.s32.totalorder %s27, 1
      %p229 = por %p227, %p228
      %p231 = scmp.ne.s32.totalorder %s214, %s230
      %p232 = scmp.eq.s32.totalorder %s27, 0
      %p233 = por %p231, %p232
      %p234 = scmp.le.s32.totalorder 1, %s21
      %p235 = scmp.lt.s32.totalorder %s21, 3
      %p236 = pnand %p234, %p235
      %p237 = pneg %p236
      // Predicated region
      $region9: #{tpu_custom_call.1} parent=5 // pred_check
        _
      $region10: #{tpu_custom_call.1} parent=5 // pred_check_branch
        %239 = sbr.rel (%p236) target = $region12
      $region11: #{tpu_custom_call.1} parent=5 // pred_region
        %s240 = ssub.s32 %s21, 1
        // Predicated region
        $region13: #{tpu_custom_call.1} parent=11 // pred_check
          %p241 = pneg %p80
        $region14: #{tpu_custom_call.1} parent=11 // pred_check_branch
          %243 = sbr.rel (%p241) target = $region16
        $region15: #{tpu_custom_call.1} parent=11 // pred_region
          %s245 = ssub.s32 128, 128
          %246 = vsyncadd [#allocation8], %s245
          %s248 = sshll.u32 [#allocation7], 4
          %s249 = int_to_ptr.vmem [resolvable:$true] %s248
          %251 = dma.hbm_to_vmem [thread:$0]  %s1, 128, %s249, [#allocation8]
        $region16: #{tpu_custom_call.1} parent=11 // pred_fallthru
          _
        // Predicated region
        $region17: #{tpu_custom_call.1} parent=11 // pred_check
          %p252 = pneg %p101
        $region18: #{tpu_custom_call.1} parent=11 // pred_check_branch
          %254 = sbr.rel (%p252) target = $region20
        $region19: #{tpu_custom_call.1} parent=11 // pred_region
          %s256 = ssub.s32 128, 128
          %257 = vsyncadd [#allocation8], %s256
          %s259 = sshll.u32 [#allocation9], 4
          %s260 = int_to_ptr.vmem [resolvable:$true] %s259
          %262 = dma.hbm_to_vmem [thread:$0]  %s2, 128, %s260, [#allocation8]
        $region20: #{tpu_custom_call.1} parent=11 // pred_fallthru
          _
        // Predicated region
        $region21: #{tpu_custom_call.1} parent=11 // pred_check
          %p263 = pneg %p127
        $region22: #{tpu_custom_call.1} parent=11 // pred_check_branch
          %265 = sbr.rel (%p263) target = $region24
        $region23: #{tpu_custom_call.1} parent=11 // pred_region
          %s267 = ssub.s32 256, 256
          %268 = vsyncadd [#allocation11], %s267
          %s269 = smul.addr %s31, 4
          %s270 = smul.addr %s269, 64
          %s271 = scalar_lea.hbm %s3, %s270
          %s272 = sshll.u32 [#allocation10], 4
          %s273 = int_to_ptr.vmem [resolvable:$true] %s272
          %278 = dma.hbm_to_vmem [thread:$0]  %s271, 256, %s273, [#allocation11], 64, 64, 4
        $region24: #{tpu_custom_call.1} parent=11 // pred_fallthru
          _
        // Predicated region
        $region25: #{tpu_custom_call.1} parent=11 // pred_check
          %p279 = pneg %p153
        $region26: #{tpu_custom_call.1} parent=11 // pred_check_branch
          %281 = sbr.rel (%p279) target = $region28
        $region27: #{tpu_custom_call.1} parent=11 // pred_region
          %p282 = scmp.lt.s32.totalorder %s31, 0
          %s283 = scalar_select %p282, %s31, 0
          %s284 = scalar_lea.vmem %s4, %s283
        $region28: #{tpu_custom_call.1} parent=11 // pred_fallthru
          _
        // Predicated region
        $region29: #{tpu_custom_call.1} parent=11 // pred_check
          %p285 = pneg %p179
        $region30: #{tpu_custom_call.1} parent=11 // pred_check_branch
          %287 = sbr.rel (%p285) target = $region32
        $region31: #{tpu_custom_call.1} parent=11 // pred_region
          %p288 = scmp.lt.s32.totalorder %s31, 0
          %s289 = scalar_select %p288, %s31, 0
          %s290 = smul.addr %s289, 4
          %s291 = smul.addr %s290, 4
          %s292 = scalar_lea.vmem %s5, %s291
        $region32: #{tpu_custom_call.1} parent=11 // pred_fallthru
          _
        // Predicated region
        $region33: #{tpu_custom_call.1} parent=11 // pred_check
          %p293 = pneg %p200
        $region34: #{tpu_custom_call.1} parent=11 // pred_check_branch
          %295 = sbr.rel (%p293) target = $region36
        $region35: #{tpu_custom_call.1} parent=11 // pred_region
          _
        $region36: #{tpu_custom_call.1} parent=11 // pred_fallthru
          _
      $region12: #{tpu_custom_call.1} parent=5 // pred_fallthru
        _
      %p296 = scmp.lt.s32.totalorder %s21, 2
      // Predicated region
      $region37: #{tpu_custom_call.1} parent=5 // pred_check
        %p297 = pneg %p296
      $region38: #{tpu_custom_call.1} parent=5 // pred_check_branch
        %299 = sbr.rel (%p297) target = $region40
      $region39: #{tpu_custom_call.1} parent=5 // pred_region
        // Predicated region
        $region41: #{tpu_custom_call.1} parent=39 // pred_check
          %p300 = pneg %p53
        $region42: #{tpu_custom_call.1} parent=39 // pred_check_branch
          %302 = sbr.rel (%p300) target = $region44
        $region43: #{tpu_custom_call.1} parent=39 // pred_region
          %s303 = sand.u32 %s43, 1
          %s304 = scalar_lea.sflag [#allocation5], %s303
          %s305 = sand.u32 %s43, 1
          %s306 = smul.addr %s305, 8
          %s307 = scalar_lea.vmem [#allocation4], %s306
          %s309 = ssub.s32 128, 128
          %310 = vsyncadd %s304, %s309
          %s311 = smul.addr %s28, 128
          %s312 = scalar_lea.hbm %s0, %s311
          %s314 = sshll.u32 %s307, 4
          %s315 = int_to_ptr.vmem [resolvable:$true] %s314
          %317 = dma.hbm_to_vmem [thread:$0]  %s312, 128, %s315, %s304
        $region44: #{tpu_custom_call.1} parent=39 // pred_fallthru
          _
      $region40: #{tpu_custom_call.1} parent=5 // pred_fallthru
        _
      %p318 = scmp.le.s32.totalorder 1, %s21
      %p319 = scmp.lt.s32.totalorder %s21, 3
      %p320 = pnand %p318, %p319
      %p321 = pneg %p320
      // Predicated region
      $region45: #{tpu_custom_call.1} parent=5 // pred_check
        _
      $region46: #{tpu_custom_call.1} parent=5 // pred_check_branch
        %323 = sbr.rel (%p320) target = $region48
      $region47: #{tpu_custom_call.1} parent=5 // pred_region
        %s324 = ssub.s32 %s21, 1
        %s325 = sand.u32 %s46, 1
        %s326 = scalar_lea.sflag [#allocation5], %s325
        %s327 = sand.u32 %s46, 1
        %s328 = smul.addr %s327, 8
        %s329 = scalar_lea.vmem [#allocation4], %s328
        // Predicated region
        $region49: #{tpu_custom_call.1} parent=47 // pred_check
          %p330 = pneg %p59
        $region50: #{tpu_custom_call.1} parent=47 // pred_check_branch
          %332 = sbr.rel (%p330) target = $region52
        $region51: #{tpu_custom_call.1} parent=47 // pred_region
          %333 = dma.done %s326, 128
        $region52: #{tpu_custom_call.1} parent=47 // pred_fallthru
          _
        // Predicated region
        $region53: #{tpu_custom_call.1} parent=47 // pred_check
          %p334 = pneg %p80
        $region54: #{tpu_custom_call.1} parent=47 // pred_check_branch
          %336 = sbr.rel (%p334) target = $region56
        $region55: #{tpu_custom_call.1} parent=47 // pred_region
          %337 = dma.done [#allocation8], 128
        $region56: #{tpu_custom_call.1} parent=47 // pred_fallthru
          _
        // Predicated region
        $region57: #{tpu_custom_call.1} parent=47 // pred_check
          %p338 = pneg %p101
        $region58: #{tpu_custom_call.1} parent=47 // pred_check_branch
          %340 = sbr.rel (%p338) target = $region60
        $region59: #{tpu_custom_call.1} parent=47 // pred_region
          %341 = dma.done [#allocation8], 128
        $region60: #{tpu_custom_call.1} parent=47 // pred_fallthru
          _
        // Predicated region
        $region61: #{tpu_custom_call.1} parent=47 // pred_check
          %p342 = pneg %p127
        $region62: #{tpu_custom_call.1} parent=47 // pred_check_branch
          %344 = sbr.rel (%p342) target = $region64
        $region63: #{tpu_custom_call.1} parent=47 // pred_region
          %345 = dma.done [#allocation11], 256
        $region64: #{tpu_custom_call.1} parent=47 // pred_fallthru
          _
        %s346 = sand.u32 %s46, 1
        %s347 = scalar_lea.sflag [#allocation5], %s346
        %s348 = sand.u32 %s46, 1
        %s349 = smul.addr %s348, 8
        %s350 = scalar_lea.vmem [#allocation4], %s349
        %p351 = pneg %p59
        %p352 = pneg %p56
        %p353 = pneg %p80
        %p354 = pneg %p77
        %p355 = pneg %p101
        %p356 = pneg %p98
        %p357 = pneg %p127
        %p358 = pneg %p124
        %p359 = scmp.lt.s32.totalorder %s31, 0
        %s360 = scalar_select %p359, %s31, 0
        %s361 = scalar_lea.vmem %s4, %s360
        %p362 = pneg %p153
        %p363 = pneg %p150
        %p364 = scmp.lt.s32.totalorder %s31, 0
        %s365 = scalar_select %p364, %s31, 0
        %s366 = smul.addr %s365, 4
        %s367 = smul.addr %s366, 4
        %s368 = scalar_lea.vmem %s5, %s367
        %p369 = pneg %p179
        %p370 = pneg %p176
        %p371 = pneg %p200
        %p372 = pneg %p197
        %p373 = pneg %p226
        %p374 = pneg %p223
        %s375 = sand.u32 %s213, 1
        %s376 = scalar_lea.sflag [#allocation6], %s375
        %s377 = sand.u32 %s213, 1
        %s378 = smul.addr %s377, 8
        %s379 = scalar_lea.vmem [#allocation12], %s378
        %p380 = scmp.lt.s32.totalorder %s31, 0
        %s381 = scalar_select %p380, %s31, 0
        %s382 = scalar_lea.vmem %s4, %s381
        %p383 = scmp.lt.s32.totalorder %s31, 0
        %s384 = scalar_select %p383, %s31, 0
        %s385 = smul.addr %s384, 4
        %s386 = smul.addr %s385, 4
        %s387 = scalar_lea.vmem %s5, %s386
        %p389 = scmp.eq.s32.totalorder %s31, 0
        // Predicated region
        $region65: #{tpu_custom_call.1} parent=47 // pred_check
          %p390 = pneg %p389
        $region66: #{tpu_custom_call.1} parent=47 // pred_check_branch
          %392 = sbr.rel (%p390) target = $region68
        $region67: #{tpu_custom_call.1} parent=47 // pred_region
          %v393 = vld [vmem:[%s329] sm:$0xff]
          %v394 = vmul.f32 %v393, %v393
          %vm395 = vcmask 261120
          %v396 = vsel %vm395, %v394, 0.0
          %397 = vadd.xlane.f32.xlu0 %v396
          %v398 = vpop.xlane.xlu0 %397
          %v399 = vrcp.pop 32.0
          %v400 = vmul.f32 %v398, %v399
          %v401 = vadd.f32 %v400, 1e-06
          %v402 = vrsqrt.pop %v401
          %v403 = vmul.f32 %v393, %v402
          %v404 = vpack.c.bf16 %v403, %v403
          %vm405 = vcmask 257024
          %406 = vst.msk [vmem:[#allocation2] sm:$0xf] %vm405, %v404
          %v407 = vld [vmem:[%s6] sm:$0x1]
          %v409 = vlaneseq
          %v410 = vshrl.u32 %v409, 7
          %v411 = vsub.s32 0, %v410
          %v412 = vrot.slane %v407, %v411
          %414 = vst.msk [vmem:[#allocation3] sm:$0xff] %vm395, %v412
        $region68: #{tpu_custom_call.1} parent=47 // pred_fallthru
          _
        %v415 = vld [vmem:[#allocation2] sm:$0xf]
        %v416 = vld [vmem:[#allocation10] sm:$0xf]
        %v417 = vld [vmem:[#allocation10 + $0x4] sm:$0xf]
        %v418 = vld [vmem:[#allocation10 + $0x8] sm:$0xf]
        %v419 = vld [vmem:[#allocation10 + $0xc] sm:$0xf]
        %v420 = vld [vmem:[%s382] sm:$0x1]
        %v422 = vlaneseq
        %v423 = vshrl.u32 %v422, 7
        %v424 = vsub.s32 0, %v423
        %v425 = vrot.slane %v420, %v424
        %v431 = vunpack.c.l.b16 %v416
        %v432 = vunpack.c.l.b16 %v417
        %v433 = vunpack.c.l.b16 %v418
        %v434 = vunpack.c.l.b16 %v419
        %v435 = vpack.c.b16 %v432, %v431
        %v436 = vpack.c.b16 %v434, %v433
        %vm439 = vcmask 261120
        %v441 = vsel %vm439, %v415, 0
        %443 = vmatprep.subr.bf16.mxu0 0
        %444 = vmatpush1.bf16.msra.mxu0 %v435
        %445 = vmatprep.subr.bf16.mxu0 0
        %446 = vmatpush1.bf16.msra.mxu0 %v436
        %447 = vmatprep.subr.bf16.mxu0 0
        %448 = vmatpush1.bf16.msra.mxu0 0
        %449 = vmatprep.subr.bf16.mxu0 0
        %450 = vmatpush1.bf16.msra.mxu0 0
        %451 = vmatprep.subr.bf16.mxu0 0
        %452 = vmatpush1.bf16.msra.mxu0 0
        %453 = vmatprep.subr.bf16.mxu0 0
        %454 = vmatpush1.bf16.msra.mxu0 0
        %455 = vmatprep.subr.bf16.mxu0 0
        %456 = vmatpush1.bf16.msra.mxu0 0
        %457 = vmatprep.subr.bf16.mxu0 0
        %458 = vmatpush1.bf16.msra.mxu0 0
        %459 = vmatprep.subr.bf16.mxu0 0
        %460 = vmatpush1.bf16.msra.mxu0 0
        %461 = vmatprep.subr.bf16.mxu0 0
        %462 = vmatpush1.bf16.msra.mxu0 0
        %463 = vmatprep.subr.bf16.mxu0 0
        %464 = vmatpush1.bf16.msra.mxu0 0
        %465 = vmatprep.subr.bf16.mxu0 0
        %466 = vmatpush1.bf16.msra.mxu0 0
        %467 = vmatprep.subr.bf16.mxu0 0
        %468 = vmatpush1.bf16.msra.mxu0 0
        %469 = vmatprep.subr.bf16.mxu0 0
        %470 = vmatpush1.bf16.msra.mxu0 0
        %471 = vmatprep.subr.bf16.mxu0 0
        %472 = vmatpush1.bf16.msra.mxu0 0
        %473 = vmatprep.subr.bf16.mxu0 0
        %474 = vmatpush1.bf16.msra.mxu0 0
        %475 = vmatprep.mubr.bf16.mxu0 0
        %476 = vmatmul.mubr.bf16.gmra.mrb[0].mxu0 %v441
        %v477 = vpop.f32.mrb[0].mxu0
        %v478 = vadd.f32 %v425, %v477
        %v479 = vpop.f32.mrb[0].mxu0
        %v480 = vpop.f32.mrb[0].mxu0
        %v481 = vpop.f32.mrb[0].mxu0
        %482 = vdwg.mxu0
        %v483 = vld [vmem:[#allocation7] sm:$0xff]
        %v484 = vld [vmem:[#allocation9] sm:$0xff]
        %v485 = vsub.f32 0.0, %v478
        %487 = vrot.lane.b32.xlu0 %v485, 124
        %v488 = vpop.permute.xlu0 %487
        %491 = vrot.lane.b32.xlu0 %v478, 4
        %v492 = vpop.permute.xlu0 %491
        %vm494 = vcmask 31744
        %v495 = vsel %vm494, %v488, %v492
        %v496 = vmul.f32 %v478, %v483
        %v497 = vmul.f32 %v495, %v484
        %v498 = vadd.f32 %v496, %v497
        %499 = vrot.lane.b32.xlu0 %v485, 92
        %v500 = vpop.permute.xlu0 %499
        %502 = vrot.lane.b32.xlu0 %v478, 100
        %v503 = vpop.permute.xlu0 %502
        %v505 = vsel %vm494, %v500, %v503
        %507 = vrot.lane.b32.xlu0 %v483, 32
        %v508 = vpop.permute.xlu0 %507
        %v510 = vmul.f32 %v478, %v508
        %v511 = vmul.f32 %v505, %v484
        %513 = vrot.lane.b32.xlu0 %v511, 32
        %v514 = vpop.permute.xlu0 %513
        %v516 = vadd.f32 %v510, %v514
        %v517 = vpack.c.bf16 %v498, %v498
        %v518 = vpack.c.bf16 %v516, %v516
        %520 = vrot.lane.b32.xlu0 %v518, 96
        %v521 = vpop.permute.xlu0 %520
        %vm522 = vcmask 64512
        %v524 = vsel %vm522, %v517, 0
        %v527 = vsel %vm522, %v521, 0
        %529 = vmatprep.subr.bf16.mxu0 0
        %530 = vmatpush1.bf16.xpose.msra.mxu0 %v527
        %531 = vmatprep.subr.bf16.mxu0 0
        %532 = vmatpush1.bf16.xpose.msra.mxu0 0
        %533 = vmatprep.subr.bf16.mxu0 0
        %534 = vmatpush1.bf16.xpose.msra.mxu0 0
        %535 = vmatprep.subr.bf16.mxu0 0
        %536 = vmatpush1.bf16.xpose.msra.mxu0 0
        %537 = vmatprep.subr.bf16.mxu0 0
        %538 = vmatpush1.bf16.xpose.msra.mxu0 0
        %539 = vmatprep.subr.bf16.mxu0 0
        %540 = vmatpush1.bf16.xpose.msra.mxu0 0
        %541 = vmatprep.subr.bf16.mxu0 0
        %542 = vmatpush1.bf16.xpose.msra.mxu0 0
        %543 = vmatprep.subr.bf16.mxu0 0
        %544 = vmatpush1.bf16.xpose.msra.mxu0 0
        %545 = vmatprep.subr.bf16.mxu0 0
        %546 = vmatpush1.bf16.xpose.msra.mxu0 0
        %547 = vmatprep.subr.bf16.mxu0 0
        %548 = vmatpush1.bf16.xpose.msra.mxu0 0
        %549 = vmatprep.subr.bf16.mxu0 0
        %550 = vmatpush1.bf16.xpose.msra.mxu0 0
        %551 = vmatprep.subr.bf16.mxu0 0
        %552 = vmatpush1.bf16.xpose.msra.mxu0 0
        %553 = vmatprep.subr.bf16.mxu0 0
        %554 = vmatpush1.bf16.xpose.msra.mxu0 0
        %555 = vmatprep.subr.bf16.mxu0 0
        %556 = vmatpush1.bf16.xpose.msra.mxu0 0
        %557 = vmatprep.subr.bf16.mxu0 0
        %558 = vmatpush1.bf16.xpose.msra.mxu0 0
        %559 = vmatprep.subr.bf16.mxu0 0
        %560 = vmatpush1.bf16.xpose.msra.mxu0 0
        %561 = vmatprep.mubr.bf16.mxu0 0
        %562 = vmatmul.mubr.bf16.gmra.mrb[0].mxu0 %v524
        %v563 = vpop.f32.mrb[0].mxu0
        %v564 = vadd.f32 0.0, %v563
        %v565 = vpop.f32.mrb[0].mxu0
        %v566 = vpop.f32.mrb[0].mxu0
        %v567 = vpop.f32.mrb[0].mxu0
        %568 = vdwg.mxu0
        %v569 = vlaneseq
        %v570 = vshrl.u32 %v569, 7
        %v571 = vlaneseq
        %v572 = vand.u32 %v571, 127
        %vm573 = vcmp.ge.s32.totalorder %v570, %v572
        %v574 = vsel %vm573, %v564, -1e+09
        %v575 = vsel %vm522, %v574, -inf
        %576 = vmax.xlane.f32.xlu0 %v575
        %v577 = vpop.xlane.xlu0 %576
        %v578 = vsub.f32 %v574, %v577
        %v579 = vmul.f32 %v578, 1.442695
        %v580 = vpow.pop %v579
        %v581 = vsel %vm522, %v580, 0.0
        %582 = vadd.xlane.f32.xlu0 %v581
        %v583 = vpop.xlane.xlu0 %582
        %v584 = vrcp.pop %v583
        %v585 = vmul.f32 %v580, %v584
        %v586 = vpack.c.bf16 %v585, %v585
        %v587 = vpack.c.bf16 %v478, %v478
        %589 = vrot.lane.b32.xlu0 %v587, 64
        %v590 = vpop.permute.xlu0 %589
        %v592 = vsel %vm522, %v586, 0
        %vm594 = vcmask 1043456
        %v596 = vsel %vm594, %v590, 0
        %598 = vmatprep.subr.bf16.mxu0 0
        %599 = vmatpush1.bf16.msra.mxu0 %v596
        %600 = vmatprep.subr.bf16.mxu0 0
        %601 = vmatpush1.bf16.msra.mxu0 0
        %602 = vmatprep.subr.bf16.mxu0 0
        %603 = vmatpush1.bf16.msra.mxu0 0
        %604 = vmatprep.subr.bf16.mxu0 0
        %605 = vmatpush1.bf16.msra.mxu0 0
        %606 = vmatprep.subr.bf16.mxu0 0
        %607 = vmatpush1.bf16.msra.mxu0 0
        %608 = vmatprep.subr.bf16.mxu0 0
        %609 = vmatpush1.bf16.msra.mxu0 0
        %610 = vmatprep.subr.bf16.mxu0 0
        %611 = vmatpush1.bf16.msra.mxu0 0
        %612 = vmatprep.subr.bf16.mxu0 0
        %613 = vmatpush1.bf16.msra.mxu0 0
        %614 = vmatprep.subr.bf16.mxu0 0
        %615 = vmatpush1.bf16.msra.mxu0 0
        %616 = vmatprep.subr.bf16.mxu0 0
        %617 = vmatpush1.bf16.msra.mxu0 0
        %618 = vmatprep.subr.bf16.mxu0 0
        %619 = vmatpush1.bf16.msra.mxu0 0
        %620 = vmatprep.subr.bf16.mxu0 0
        %621 = vmatpush1.bf16.msra.mxu0 0
        %622 = vmatprep.subr.bf16.mxu0 0
        %623 = vmatpush1.bf16.msra.mxu0 0
        %624 = vmatprep.subr.bf16.mxu0 0
        %625 = vmatpush1.bf16.msra.mxu0 0
        %626 = vmatprep.subr.bf16.mxu0 0
        %627 = vmatpush1.bf16.msra.mxu0 0
        %628 = vmatprep.subr.bf16.mxu0 0
        %629 = vmatpush1.bf16.msra.mxu0 0
        %630 = vmatprep.mubr.bf16.mxu0 0
        %631 = vmatmul.mubr.bf16.gmra.mrb[0].mxu0 %v592
        %v632 = vpop.f32.mrb[0].mxu0
        %v633 = vadd.f32 0.0, %v632
        %v634 = vpop.f32.mrb[0].mxu0
        %v635 = vpop.f32.mrb[0].mxu0
        %v636 = vpop.f32.mrb[0].mxu0
        %637 = vdwg.mxu0
        %638 = vrot.lane.b32.xlu0 %v485, 116
        %v639 = vpop.permute.xlu0 %638
        %641 = vrot.lane.b32.xlu0 %v478, 124
        %v642 = vpop.permute.xlu0 %641
        %v644 = vsel %vm494, %v639, %v642
        %645 = vrot.lane.b32.xlu0 %v483, 8
        %v646 = vpop.permute.xlu0 %645
        %v648 = vmul.f32 %v478, %v646
        %v649 = vmul.f32 %v644, %v484
        %651 = vrot.lane.b32.xlu0 %v649, 8
        %v652 = vpop.permute.xlu0 %651
        %v654 = vadd.f32 %v648, %v652
        %655 = vrot.lane.b32.xlu0 %v485, 84
        %v656 = vpop.permute.xlu0 %655
        %658 = vrot.lane.b32.xlu0 %v478, 92
        %v659 = vpop.permute.xlu0 %658
        %v661 = vsel %vm494, %v656, %v659
        %662 = vrot.lane.b32.xlu0 %v483, 40
        %v663 = vpop.permute.xlu0 %662
        %v665 = vmul.f32 %v478, %v663
        %v666 = vmul.f32 %v661, %v484
        %668 = vrot.lane.b32.xlu0 %v666, 40
        %v669 = vpop.permute.xlu0 %668
        %v671 = vadd.f32 %v665, %v669
        %v672 = vpack.c.bf16 %v654, %v654
        %v673 = vpack.c.bf16 %v671, %v671
        %675 = vrot.lane.b32.xlu0 %v672, 120
        %v676 = vpop.permute.xlu0 %675
        %678 = vrot.lane.b32.xlu0 %v673, 88
        %v679 = vpop.permute.xlu0 %678
        %v681 = vsel %vm522, %v676, 0
        %v684 = vsel %vm522, %v679, 0
        %686 = vmatprep.subr.bf16.mxu0 0
        %687 = vmatpush1.bf16.xpose.msra.mxu0 %v684
        %688 = vmatprep.subr.bf16.mxu0 0
        %689 = vmatpush1.bf16.xpose.msra.mxu0 0
        %690 = vmatprep.subr.bf16.mxu0 0
        %691 = vmatpush1.bf16.xpose.msra.mxu0 0
        %692 = vmatprep.subr.bf16.mxu0 0
        %693 = vmatpush1.bf16.xpose.msra.mxu0 0
        %694 = vmatprep.subr.bf16.mxu0 0
        %695 = vmatpush1.bf16.xpose.msra.mxu0 0
        %696 = vmatprep.subr.bf16.mxu0 0
        %697 = vmatpush1.bf16.xpose.msra.mxu0 0
        %698 = vmatprep.subr.bf16.mxu0 0
        %699 = vmatpush1.bf16.xpose.msra.mxu0 0
        %700 = vmatprep.subr.bf16.mxu0 0
        %701 = vmatpush1.bf16.xpose.msra.mxu0 0
        %702 = vmatprep.subr.bf16.mxu0 0
        %703 = vmatpush1.bf16.xpose.msra.mxu0 0
        %704 = vmatprep.subr.bf16.mxu0 0
        %705 = vmatpush1.bf16.xpose.msra.mxu0 0
        %706 = vmatprep.subr.bf16.mxu0 0
        %707 = vmatpush1.bf16.xpose.msra.mxu0 0
        %708 = vmatprep.subr.bf16.mxu0 0
        %709 = vmatpush1.bf16.xpose.msra.mxu0 0
        %710 = vmatprep.subr.bf16.mxu0 0
        %711 = vmatpush1.bf16.xpose.msra.mxu0 0
        %712 = vmatprep.subr.bf16.mxu0 0
        %713 = vmatpush1.bf16.xpose.msra.mxu0 0
        %714 = vmatprep.subr.bf16.mxu0 0
        %715 = vmatpush1.bf16.xpose.msra.mxu0 0
        %716 = vmatprep.subr.bf16.mxu0 0
        %717 = vmatpush1.bf16.xpose.msra.mxu0 0
        %718 = vmatprep.mubr.bf16.mxu0 0
        %719 = vmatmul.mubr.bf16.gmra.mrb[0].mxu0 %v681
        %v720 = vpop.f32.mrb[0].mxu0
        %v721 = vadd.f32 0.0, %v720
        %v722 = vpop.f32.mrb[0].mxu0
        %v723 = vpop.f32.mrb[0].mxu0
        %v724 = vpop.f32.mrb[0].mxu0
        %725 = vdwg.mxu0
        %v726 = vsel %vm573, %v721, -1e+09
        %v727 = vsel %vm522, %v726, -inf
        %728 = vmax.xlane.f32.xlu0 %v727
        %v729 = vpop.xlane.xlu0 %728
        %v730 = vsub.f32 %v726, %v729
        %v731 = vmul.f32 %v730, 1.442695
        %v732 = vpow.pop %v731
        %v733 = vsel %vm522, %v732, 0.0
        %734 = vadd.xlane.f32.xlu0 %v733
        %v735 = vpop.xlane.xlu0 %734
        %v736 = vrcp.pop %v735
        %v737 = vmul.f32 %v732, %v736
        %v738 = vpack.c.bf16 %v737, %v737
        %739 = vrot.lane.b32.xlu0 %v587, 56
        %v740 = vpop.permute.xlu0 %739
        %v742 = vsel %vm522, %v738, 0
        %v745 = vsel %vm594, %v740, 0
        %747 = vmatprep.subr.bf16.mxu0 0
        %748 = vmatpush1.bf16.msra.mxu0 %v745
        %749 = vmatprep.subr.bf16.mxu0 0
        %750 = vmatpush1.bf16.msra.mxu0 0
        %751 = vmatprep.subr.bf16.mxu0 0
        %752 = vmatpush1.bf16.msra.mxu0 0
        %753 = vmatprep.subr.bf16.mxu0 0
        %754 = vmatpush1.bf16.msra.mxu0 0
        %755 = vmatprep.subr.bf16.mxu0 0
        %756 = vmatpush1.bf16.msra.mxu0 0
        %757 = vmatprep.subr.bf16.mxu0 0
        %758 = vmatpush1.bf16.msra.mxu0 0
        %759 = vmatprep.subr.bf16.mxu0 0
        %760 = vmatpush1.bf16.msra.mxu0 0
        %761 = vmatprep.subr.bf16.mxu0 0
        %762 = vmatpush1.bf16.msra.mxu0 0
        %763 = vmatprep.subr.bf16.mxu0 0
        %764 = vmatpush1.bf16.msra.mxu0 0
        %765 = vmatprep.subr.bf16.mxu0 0
        %766 = vmatpush1.bf16.msra.mxu0 0
        %767 = vmatprep.subr.bf16.mxu0 0
        %768 = vmatpush1.bf16.msra.mxu0 0
        %769 = vmatprep.subr.bf16.mxu0 0
        %770 = vmatpush1.bf16.msra.mxu0 0
        %771 = vmatprep.subr.bf16.mxu0 0
        %772 = vmatpush1.bf16.msra.mxu0 0
        %773 = vmatprep.subr.bf16.mxu0 0
        %774 = vmatpush1.bf16.msra.mxu0 0
        %775 = vmatprep.subr.bf16.mxu0 0
        %776 = vmatpush1.bf16.msra.mxu0 0
        %777 = vmatprep.subr.bf16.mxu0 0
        %778 = vmatpush1.bf16.msra.mxu0 0
        %779 = vmatprep.mubr.bf16.mxu0 0
        %780 = vmatmul.mubr.bf16.gmra.mrb[0].mxu0 %v742
        %v781 = vpop.f32.mrb[0].mxu0
        %v782 = vadd.f32 0.0, %v781
        %v783 = vpop.f32.mrb[0].mxu0
        %v784 = vpop.f32.mrb[0].mxu0
        %v785 = vpop.f32.mrb[0].mxu0
        %786 = vdwg.mxu0
        %787 = vrot.lane.b32.xlu0 %v485, 108
        %v788 = vpop.permute.xlu0 %787
        %790 = vrot.lane.b32.xlu0 %v478, 116
        %v791 = vpop.permute.xlu0 %790
        %v793 = vsel %vm494, %v788, %v791
        %794 = vrot.lane.b32.xlu0 %v483, 16
        %v795 = vpop.permute.xlu0 %794
        %v797 = vmul.f32 %v478, %v795
        %v798 = vmul.f32 %v793, %v484
        %800 = vrot.lane.b32.xlu0 %v798, 16
        %v801 = vpop.permute.xlu0 %800
        %v803 = vadd.f32 %v797, %v801
        %804 = vrot.lane.b32.xlu0 %v485, 76
        %v805 = vpop.permute.xlu0 %804
        %807 = vrot.lane.b32.xlu0 %v478, 84
        %v808 = vpop.permute.xlu0 %807
        %v810 = vsel %vm494, %v805, %v808
        %811 = vrot.lane.b32.xlu0 %v483, 48
        %v812 = vpop.permute.xlu0 %811
        %v814 = vmul.f32 %v478, %v812
        %v815 = vmul.f32 %v810, %v484
        %817 = vrot.lane.b32.xlu0 %v815, 48
        %v818 = vpop.permute.xlu0 %817
        %v820 = vadd.f32 %v814, %v818
        %v821 = vpack.c.bf16 %v803, %v803
        %v822 = vpack.c.bf16 %v820, %v820
        %824 = vrot.lane.b32.xlu0 %v821, 112
        %v825 = vpop.permute.xlu0 %824
        %827 = vrot.lane.b32.xlu0 %v822, 80
        %v828 = vpop.permute.xlu0 %827
        %v830 = vsel %vm522, %v825, 0
        %v833 = vsel %vm522, %v828, 0
        %835 = vmatprep.subr.bf16.mxu0 0
        %836 = vmatpush1.bf16.xpose.msra.mxu0 %v833
        %837 = vmatprep.subr.bf16.mxu0 0
        %838 = vmatpush1.bf16.xpose.msra.mxu0 0
        %839 = vmatprep.subr.bf16.mxu0 0
        %840 = vmatpush1.bf16.xpose.msra.mxu0 0
        %841 = vmatprep.subr.bf16.mxu0 0
        %842 = vmatpush1.bf16.xpose.msra.mxu0 0
        %843 = vmatprep.subr.bf16.mxu0 0
        %844 = vmatpush1.bf16.xpose.msra.mxu0 0
        %845 = vmatprep.subr.bf16.mxu0 0
        %846 = vmatpush1.bf16.xpose.msra.mxu0 0
        %847 = vmatprep.subr.bf16.mxu0 0
        %848 = vmatpush1.bf16.xpose.msra.mxu0 0
        %849 = vmatprep.subr.bf16.mxu0 0
        %850 = vmatpush1.bf16.xpose.msra.mxu0 0
        %851 = vmatprep.subr.bf16.mxu0 0
        %852 = vmatpush1.bf16.xpose.msra.mxu0 0
        %853 = vmatprep.subr.bf16.mxu0 0
        %854 = vmatpush1.bf16.xpose.msra.mxu0 0
        %855 = vmatprep.subr.bf16.mxu0 0
        %856 = vmatpush1.bf16.xpose.msra.mxu0 0
        %857 = vmatprep.subr.bf16.mxu0 0
        %858 = vmatpush1.bf16.xpose.msra.mxu0 0
        %859 = vmatprep.subr.bf16.mxu0 0
        %860 = vmatpush1.bf16.xpose.msra.mxu0 0
        %861 = vmatprep.subr.bf16.mxu0 0
        %862 = vmatpush1.bf16.xpose.msra.mxu0 0
        %863 = vmatprep.subr.bf16.mxu0 0
        %864 = vmatpush1.bf16.xpose.msra.mxu0 0
        %865 = vmatprep.subr.bf16.mxu0 0
        %866 = vmatpush1.bf16.xpose.msra.mxu0 0
        %867 = vmatprep.mubr.bf16.mxu0 0
        %868 = vmatmul.mubr.bf16.gmra.mrb[0].mxu0 %v830
        %v869 = vpop.f32.mrb[0].mxu0
        %v870 = vadd.f32 0.0, %v869
        %v871 = vpop.f32.mrb[0].mxu0
        %v872 = vpop.f32.mrb[0].mxu0
        %v873 = vpop.f32.mrb[0].mxu0
        %874 = vdwg.mxu0
        %v875 = vsel %vm573, %v870, -1e+09
        %v876 = vsel %vm522, %v875, -inf
        %877 = vmax.xlane.f32.xlu0 %v876
        %v878 = vpop.xlane.xlu0 %877
        %v879 = vsub.f32 %v875, %v878
        %v880 = vmul.f32 %v879, 1.442695
        %v881 = vpow.pop %v880
        %v882 = vsel %vm522, %v881, 0.0
        %883 = vadd.xlane.f32.xlu0 %v882
        %v884 = vpop.xlane.xlu0 %883
        %v885 = vrcp.pop %v884
        %v886 = vmul.f32 %v881, %v885
        %v887 = vpack.c.bf16 %v886, %v886
        %888 = vrot.lane.b32.xlu0 %v587, 48
        %v889 = vpop.permute.xlu0 %888
        %v891 = vsel %vm522, %v887, 0
        %v894 = vsel %vm594, %v889, 0
        %896 = vmatprep.subr.bf16.mxu0 0
        %897 = vmatpush1.bf16.msra.mxu0 %v894
        %898 = vmatprep.subr.bf16.mxu0 0
        %899 = vmatpush1.bf16.msra.mxu0 0
        %900 = vmatprep.subr.bf16.mxu0 0
        %901 = vmatpush1.bf16.msra.mxu0 0
        %902 = vmatprep.subr.bf16.mxu0 0
        %903 = vmatpush1.bf16.msra.mxu0 0
        %904 = vmatprep.subr.bf16.mxu0 0
        %905 = vmatpush1.bf16.msra.mxu0 0
        %906 = vmatprep.subr.bf16.mxu0 0
        %907 = vmatpush1.bf16.msra.mxu0 0
        %908 = vmatprep.subr.bf16.mxu0 0
        %909 = vmatpush1.bf16.msra.mxu0 0
        %910 = vmatprep.subr.bf16.mxu0 0
        %911 = vmatpush1.bf16.msra.mxu0 0
        %912 = vmatprep.subr.bf16.mxu0 0
        %913 = vmatpush1.bf16.msra.mxu0 0
        %914 = vmatprep.subr.bf16.mxu0 0
        %915 = vmatpush1.bf16.msra.mxu0 0
        %916 = vmatprep.subr.bf16.mxu0 0
        %917 = vmatpush1.bf16.msra.mxu0 0
        %918 = vmatprep.subr.bf16.mxu0 0
        %919 = vmatpush1.bf16.msra.mxu0 0
        %920 = vmatprep.subr.bf16.mxu0 0
        %921 = vmatpush1.bf16.msra.mxu0 0
        %922 = vmatprep.subr.bf16.mxu0 0
        %923 = vmatpush1.bf16.msra.mxu0 0
        %924 = vmatprep.subr.bf16.mxu0 0
        %925 = vmatpush1.bf16.msra.mxu0 0
        %926 = vmatprep.subr.bf16.mxu0 0
        %927 = vmatpush1.bf16.msra.mxu0 0
        %928 = vmatprep.mubr.bf16.mxu0 0
        %929 = vmatmul.mubr.bf16.gmra.mrb[0].mxu0 %v891
        %v930 = vpop.f32.mrb[0].mxu0
        %v931 = vadd.f32 0.0, %v930
        %v932 = vpop.f32.mrb[0].mxu0
        %v933 = vpop.f32.mrb[0].mxu0
        %v934 = vpop.f32.mrb[0].mxu0
        %935 = vdwg.mxu0
        %936 = vrot.lane.b32.xlu0 %v485, 100
        %v937 = vpop.permute.xlu0 %936
        %939 = vrot.lane.b32.xlu0 %v478, 108
        %v940 = vpop.permute.xlu0 %939
        %v942 = vsel %vm494, %v937, %v940
        %943 = vrot.lane.b32.xlu0 %v483, 24
        %v944 = vpop.permute.xlu0 %943
        %v946 = vmul.f32 %v478, %v944
        %v947 = vmul.f32 %v942, %v484
        %949 = vrot.lane.b32.xlu0 %v947, 24
        %v950 = vpop.permute.xlu0 %949
        %v952 = vadd.f32 %v946, %v950
        %953 = vrot.lane.b32.xlu0 %v485, 68
        %v954 = vpop.permute.xlu0 %953
        %956 = vrot.lane.b32.xlu0 %v478, 76
        %v957 = vpop.permute.xlu0 %956
        %v959 = vsel %vm494, %v954, %v957
        %960 = vrot.lane.b32.xlu0 %v483, 56
        %v961 = vpop.permute.xlu0 %960
        %v963 = vmul.f32 %v478, %v961
        %v964 = vmul.f32 %v959, %v484
        %966 = vrot.lane.b32.xlu0 %v964, 56
        %v967 = vpop.permute.xlu0 %966
        %v969 = vadd.f32 %v963, %v967
        %v970 = vpack.c.bf16 %v952, %v952
        %v971 = vpack.c.bf16 %v969, %v969
        %973 = vrot.lane.b32.xlu0 %v970, 104
        %v974 = vpop.permute.xlu0 %973
        %976 = vrot.lane.b32.xlu0 %v971, 72
        %v977 = vpop.permute.xlu0 %976
        %v979 = vsel %vm522, %v974, 0
        %v982 = vsel %vm522, %v977, 0
        %984 = vmatprep.subr.bf16.mxu0 0
        %985 = vmatpush1.bf16.xpose.msra.mxu0 %v982
        %986 = vmatprep.subr.bf16.mxu0 0
        %987 = vmatpush1.bf16.xpose.msra.mxu0 0
        %988 = vmatprep.subr.bf16.mxu0 0
        %989 = vmatpush1.bf16.xpose.msra.mxu0 0
        %990 = vmatprep.subr.bf16.mxu0 0
        %991 = vmatpush1.bf16.xpose.msra.mxu0 0
        %992 = vmatprep.subr.bf16.mxu0 0
        %993 = vmatpush1.bf16.xpose.msra.mxu0 0
        %994 = vmatprep.subr.bf16.mxu0 0
        %995 = vmatpush1.bf16.xpose.msra.mxu0 0
        %996 = vmatprep.subr.bf16.mxu0 0
        %997 = vmatpush1.bf16.xpose.msra.mxu0 0
        %998 = vmatprep.subr.bf16.mxu0 0
        %999 = vmatpush1.bf16.xpose.msra.mxu0 0
        %1000 = vmatprep.subr.bf16.mxu0 0
        %1001 = vmatpush1.bf16.xpose.msra.mxu0 0
        %1002 = vmatprep.subr.bf16.mxu0 0
        %1003 = vmatpush1.bf16.xpose.msra.mxu0 0
        %1004 = vmatprep.subr.bf16.mxu0 0
        %1005 = vmatpush1.bf16.xpose.msra.mxu0 0
        %1006 = vmatprep.subr.bf16.mxu0 0
        %1007 = vmatpush1.bf16.xpose.msra.mxu0 0
        %1008 = vmatprep.subr.bf16.mxu0 0
        %1009 = vmatpush1.bf16.xpose.msra.mxu0 0
        %1010 = vmatprep.subr.bf16.mxu0 0
        %1011 = vmatpush1.bf16.xpose.msra.mxu0 0
        %1012 = vmatprep.subr.bf16.mxu0 0
        %1013 = vmatpush1.bf16.xpose.msra.mxu0 0
        %1014 = vmatprep.subr.bf16.mxu0 0
        %1015 = vmatpush1.bf16.xpose.msra.mxu0 0
        %1016 = vmatprep.mubr.bf16.mxu0 0
        %1017 = vmatmul.mubr.bf16.gmra.mrb[0].mxu0 %v979
        %v1018 = vpop.f32.mrb[0].mxu0
        %v1019 = vadd.f32 0.0, %v1018
        %v1020 = vpop.f32.mrb[0].mxu0
        %v1021 = vpop.f32.mrb[0].mxu0
        %v1022 = vpop.f32.mrb[0].mxu0
        %1023 = vdwg.mxu0
        %v1024 = vsel %vm573, %v1019, -1e+09
        %v1025 = vsel %vm522, %v1024, -inf
        %1026 = vmax.xlane.f32.xlu0 %v1025
        %v1027 = vpop.xlane.xlu0 %1026
        %v1028 = vsub.f32 %v1024, %v1027
        %v1029 = vmul.f32 %v1028, 1.442695
        %v1030 = vpow.pop %v1029
        %v1031 = vsel %vm522, %v1030, 0.0
        %1032 = vadd.xlane.f32.xlu0 %v1031
        %v1033 = vpop.xlane.xlu0 %1032
        %v1034 = vrcp.pop %v1033
        %v1035 = vmul.f32 %v1030, %v1034
        %v1036 = vpack.c.bf16 %v1035, %v1035
        %1037 = vrot.lane.b32.xlu0 %v587, 40
        %v1038 = vpop.permute.xlu0 %1037
        %v1040 = vsel %vm522, %v1036, 0
        %v1043 = vsel %vm594, %v1038, 0
        %1045 = vmatprep.subr.bf16.mxu0 0
        %1046 = vmatpush1.bf16.msra.mxu0 %v1043
        %1047 = vmatprep.subr.bf16.mxu0 0
        %1048 = vmatpush1.bf16.msra.mxu0 0
        %1049 = vmatprep.subr.bf16.mxu0 0
        %1050 = vmatpush1.bf16.msra.mxu0 0
        %1051 = vmatprep.subr.bf16.mxu0 0
        %1052 = vmatpush1.bf16.msra.mxu0 0
        %1053 = vmatprep.subr.bf16.mxu0 0
        %1054 = vmatpush1.bf16.msra.mxu0 0
        %1055 = vmatprep.subr.bf16.mxu0 0
        %1056 = vmatpush1.bf16.msra.mxu0 0
        %1057 = vmatprep.subr.bf16.mxu0 0
        %1058 = vmatpush1.bf16.msra.mxu0 0
        %1059 = vmatprep.subr.bf16.mxu0 0
        %1060 = vmatpush1.bf16.msra.mxu0 0
        %1061 = vmatprep.subr.bf16.mxu0 0
        %1062 = vmatpush1.bf16.msra.mxu0 0
        %1063 = vmatprep.subr.bf16.mxu0 0
        %1064 = vmatpush1.bf16.msra.mxu0 0
        %1065 = vmatprep.subr.bf16.mxu0 0
        %1066 = vmatpush1.bf16.msra.mxu0 0
        %1067 = vmatprep.subr.bf16.mxu0 0
        %1068 = vmatpush1.bf16.msra.mxu0 0
        %1069 = vmatprep.subr.bf16.mxu0 0
        %1070 = vmatpush1.bf16.msra.mxu0 0
        %1071 = vmatprep.subr.bf16.mxu0 0
        %1072 = vmatpush1.bf16.msra.mxu0 0
        %1073 = vmatprep.subr.bf16.mxu0 0
        %1074 = vmatpush1.bf16.msra.mxu0 0
        %1075 = vmatprep.subr.bf16.mxu0 0
        %1076 = vmatpush1.bf16.msra.mxu0 0
        %1077 = vmatprep.mubr.bf16.mxu0 0
        %1078 = vmatmul.mubr.bf16.gmra.mrb[0].mxu0 %v1040
        %v1079 = vpop.f32.mrb[0].mxu0
        %v1080 = vadd.f32 0.0, %v1079
        %v1081 = vpop.f32.mrb[0].mxu0
        %v1082 = vpop.f32.mrb[0].mxu0
        %v1083 = vpop.f32.mrb[0].mxu0
        %1084 = vdwg.mxu0
        %1086 = vrot.lane.b32.xlu0 %v782, 8
        %v1087 = vpop.permute.xlu0 %1086
        %1090 = vrot.lane.b32.xlu0 %v931, 16
        %v1091 = vpop.permute.xlu0 %1090
        %1094 = vrot.lane.b32.xlu0 %v1080, 24
        %v1095 = vpop.permute.xlu0 %1094
        %v1097 = vsel %vm522, %v633, %v1087
        %vm1098 = vcmask 130048
        %v1099 = vsel %vm1098, %v1097, %v1091
        %vm1100 = vcmask 195584
        %v1101 = vsel %vm1100, %v1099, %v1095
        %v1102 = vld [vmem:[#allocation3] sm:$0xff]
        %v1103 = vpack.c.bf16 %v1101, %v1101
        %v1104 = vld [vmem:[%s387] sm:$0xf]
        %v1105 = vld [vmem:[%s387 + $0x4] sm:$0xf]
        %v1106 = vld [vmem:[%s387 + $0x8] sm:$0xf]
        %v1107 = vld [vmem:[%s387 + $0xc] sm:$0xf]
        %v1112 = vunpack.c.l.b16 %v1104
        %v1113 = vunpack.c.l.b16 %v1105
        %v1114 = vunpack.c.l.b16 %v1106
        %v1115 = vunpack.c.l.b16 %v1107
        %v1116 = vpack.c.b16 %v1113, %v1112
        %v1117 = vpack.c.b16 %v1115, %v1114
        %v1121 = vsel %vm439, %v1103, 0
        %1123 = vmatprep.subr.bf16.mxu0 0
        %1124 = vmatpush1.bf16.msra.mxu0 %v1116
        %1125 = vmatprep.subr.bf16.mxu0 0
        %1126 = vmatpush1.bf16.msra.mxu0 %v1117
        %1127 = vmatprep.subr.bf16.mxu0 0
        %1128 = vmatpush1.bf16.msra.mxu0 0
        %1129 = vmatprep.subr.bf16.mxu0 0
        %1130 = vmatpush1.bf16.msra.mxu0 0
        %1131 = vmatprep.subr.bf16.mxu0 0
        %1132 = vmatpush1.bf16.msra.mxu0 0
        %1133 = vmatprep.subr.bf16.mxu0 0
        %1134 = vmatpush1.bf16.msra.mxu0 0
        %1135 = vmatprep.subr.bf16.mxu0 0
        %1136 = vmatpush1.bf16.msra.mxu0 0
        %1137 = vmatprep.subr.bf16.mxu0 0
        %1138 = vmatpush1.bf16.msra.mxu0 0
        %1139 = vmatprep.subr.bf16.mxu0 0
        %1140 = vmatpush1.bf16.msra.mxu0 0
        %1141 = vmatprep.subr.bf16.mxu0 0
        %1142 = vmatpush1.bf16.msra.mxu0 0
        %1143 = vmatprep.subr.bf16.mxu0 0
        %1144 = vmatpush1.bf16.msra.mxu0 0
        %1145 = vmatprep.subr.bf16.mxu0 0
        %1146 = vmatpush1.bf16.msra.mxu0 0
        %1147 = vmatprep.subr.bf16.mxu0 0
        %1148 = vmatpush1.bf16.msra.mxu0 0
        %1149 = vmatprep.subr.bf16.mxu0 0
        %1150 = vmatpush1.bf16.msra.mxu0 0
        %1151 = vmatprep.subr.bf16.mxu0 0
        %1152 = vmatpush1.bf16.msra.mxu0 0
        %1153 = vmatprep.subr.bf16.mxu0 0
        %1154 = vmatpush1.bf16.msra.mxu0 0
        %1155 = vmatprep.mubr.bf16.mxu0 0
        %1156 = vmatmul.mubr.bf16.gmra.mrb[0].mxu0 %v1121
        %v1157 = vpop.f32.mrb[0].mxu0
        %v1158 = vadd.f32 0.0, %v1157
        %v1159 = vpop.f32.mrb[0].mxu0
        %v1160 = vpop.f32.mrb[0].mxu0
        %v1161 = vpop.f32.mrb[0].mxu0
        %1162 = vdwg.mxu0
        %v1163 = vadd.f32 %v1102, %v1158
        %1164 = vst.msk [vmem:[#allocation3] sm:$0xff] %vm439, %v1163
        // Predicated region
        $region69: #{tpu_custom_call.1} parent=47 // pred_check
          %p1165 = pneg %p389
        $region70: #{tpu_custom_call.1} parent=47 // pred_check_branch
          %1167 = sbr.rel (%p1165) target = $region72
        $region71: #{tpu_custom_call.1} parent=47 // pred_region
          %v1168 = vld [vmem:[#allocation3] sm:$0xff]
          %v1169 = vld [vmem:[%s329] sm:$0xff]
          %v1170 = vadd.f32 %v1168, %v1169
          %1171 = vst.msk [vmem:[%s379] sm:$0xff] %vm439, %v1170
        $region72: #{tpu_custom_call.1} parent=47 // pred_fallthru
          _
        %s1172 = sand.u32 %s213, 1
        %s1173 = scalar_lea.sflag [#allocation6], %s1172
        %s1174 = sand.u32 %s213, 1
        %s1175 = smul.addr %s1174, 8
        %s1176 = scalar_lea.vmem [#allocation12], %s1175
        // Predicated region
        $region73: #{tpu_custom_call.1} parent=47 // pred_check
          %p1177 = pneg %p223
        $region74: #{tpu_custom_call.1} parent=47 // pred_check_branch
          %1179 = sbr.rel (%p1177) target = $region76
        $region75: #{tpu_custom_call.1} parent=47 // pred_region
          %s1181 = ssub.s32 128, 128
          %1182 = vsyncadd %s1173, %s1181
          %s1183 = smul.addr %s30, 128
          %s1184 = scalar_lea.hbm %s7, %s1183
          %s1186 = sshll.u32 %s1176, 4
          %s1187 = int_to_ptr.vmem [resolvable:$true] %s1186
          %1189 = dma.vmem_to_hbm [thread:$0]  %s1187, 128, %s1184, %s1173
        $region76: #{tpu_custom_call.1} parent=47 // pred_fallthru
          _
      $region48: #{tpu_custom_call.1} parent=5 // pred_fallthru
        _
      %p1190 = scmp.le.s32.totalorder 2, %s21
      // Predicated region
      $region77: #{tpu_custom_call.1} parent=5 // pred_check
        %p1191 = pneg %p1190
      $region78: #{tpu_custom_call.1} parent=5 // pred_check_branch
        %1193 = sbr.rel (%p1191) target = $region80
      $region79: #{tpu_custom_call.1} parent=5 // pred_region
        %s1194 = ssub.s32 %s21, 2
        // Predicated region
        $region81: #{tpu_custom_call.1} parent=79 // pred_check
          %p1195 = pneg %p229
        $region82: #{tpu_custom_call.1} parent=79 // pred_check_branch
          %1197 = sbr.rel (%p1195) target = $region84
        $region83: #{tpu_custom_call.1} parent=79 // pred_region
          %s1198 = sand.u32 %s214, 1
          %s1199 = scalar_lea.sflag [#allocation6], %s1198
          %s1200 = sand.u32 %s214, 1
          %s1201 = smul.addr %s1200, 8
          %s1202 = scalar_lea.vmem [#allocation12], %s1201
          %1203 = dma.done %s1199, 128
        $region84: #{tpu_custom_call.1} parent=79 // pred_fallthru
          _
      $region80: #{tpu_custom_call.1} parent=5 // pred_fallthru
        _
    $region6: #{tpu_custom_call.1} parent=1 // loop_footer
      %s25 = sadd.s32 1, %s21
    $region7: #{tpu_custom_call.1} parent=1 // loop_footer_branch
      %20 = sbr.rel target = $region3
    $region8: #{tpu_custom_call.1} parent=1 // loop_exit
      _
    %1204 = vsyncpa [#allocation5], 1
    %s1205 = scalar_lea.sflag [#allocation5], 1
    %1206 = vsyncpa %s1205, 1
    %1207 = vsyncpa [#allocation8], 1
    %1208 = vsyncpa [#allocation11], 1
    %1209 = vsyncpa [#allocation6], 1
    %s1210 = scalar_lea.sflag [#allocation6], 1
    %1211 = vsyncpa %s1210, 1

</llo_original>
